<compile_context>
chip_gen: v5e
topology: v5e:2x2
jax: 0.10.0
libtpu: 0.0.40
codegen_flags: <defaults>
</compile_context>

<pallas_src>
import jax
import jax.numpy as jnp
from jax.experimental import pallas as pl
from jax.experimental.pallas import tpu as pltpu


def _round_up(n, m):
    return ((n + m - 1) // m) * m


# Packed-parameter layout (f32[31], SMEM):
#   [0:4)   conv1 2x2 taps, (di,dj) raster
#   [4:8)   conv2 2x2 taps, (a,b)  raster
#   [8:20)  conn1 weight (3,4) row-major
#   [20:23) conn1 bias   (3,)
#   [23:29) conn2 weight (2,3) row-major
#   [29:31) conn2 bias   (2,)
_P_W1, _P_W2, _P_FC1W, _P_FC1B, _P_FC2W, _P_FC2B = 0, 4, 8, 20, 23, 29


def convs4x44_kernel(p_ref, x_ref, cls_ref, raw_ref):
    # p_ref  : SMEM f32[31]       packed parameters (scalars)
    # x_ref  : VMEM f32[64, 8, L] rows = 8x8 raster, (8, L) = batch slab
    # cls_ref: VMEM f32[2, 8, L]  softmax probabilities
    # raw_ref: VMEM f32[2, 8, L]  raw logits
    w1 = [p_ref[_P_W1 + k] for k in range(4)]   # conv1 taps
    w2 = [p_ref[_P_W2 + k] for k in range(4)]   # conv2 taps

    # Fused conv1(2x2/s2) -> relu(.-0.2) -> conv2(2x2/s2) -> relu(.-2.0).
    # For each of the 4 conv2 outputs build its 4 conv1 inputs on the fly
    # (keeps only a couple of (8,L) slabs live at a time).
    y2 = []
    for pq in range(4):                         # conv2 output, raster p*2+q
        p2, q2 = pq // 2, pq % 2
        acc2 = None
        for ab in range(4):                     # conv2 tap, raster a*2+b
            a, b = ab // 2, ab % 2
            i, j = 2 * p2 + a, 2 * q2 + b       # conv1 output position
            r = (2 * i) * 8 + 2 * j             # top-left tap in 8x8 raster
            acc1 = (w1[0] * x_ref[r]
                    + w1[1] * x_ref[r + 1]
                    + w1[2] * x_ref[r + 8]
                    + w1[3] * x_ref[r + 9])
            y1 = jnp.maximum(acc1 - 0.2, 0.0)
            t = w2[ab] * y1
            acc2 = t if acc2 is None else acc2 + t
        y2.append(jnp.maximum(acc2 - 2.0, 0.0))  # (8, L)

    # conn1: Linear(4 -> 3) + relu  — unrolled broadcast FMAs (no MXU).
    h = []
    for m in range(3):
        acc = p_ref[_P_FC1B + m]
        for k in range(4):
            acc = acc + p_ref[_P_FC1W + 4 * m + k] * y2[k]
        h.append(jnp.maximum(acc, 0.0))

    # conn2: Linear(3 -> 2)
    out = []
    for n in range(2):
        acc = p_ref[_P_FC2B + n]
        for m in range(3):
            acc = acc + p_ref[_P_FC2W + 3 * n + m] * h[m]
        out.append(acc)

    # Numerically stable 2-class softmax (max-subtracted, EUP reciprocal).
    mx = jnp.maximum(out[0], out[1])
    e0 = jnp.exp(out[0] - mx)
    e1 = jnp.exp(out[1] - mx)
    inv = pl.reciprocal(e0 + e1, approx=True)
    cls_ref[0] = e0 * inv
    cls_ref[1] = e1 * inv
    raw_ref[0] = out[0]
    raw_ref[1] = out[1]


def convs4x44_forward(x, params, *, max_tile=8192):
    """x: (B, 1, 8, 8) float32, NCHW (PyTorch convention).
    Returns (softmax_probs (B,2), raw_logits (B,2))."""
    B = x.shape[0]
    assert x.shape[1:] == (1, 8, 8)

    # Batch tile = 8 sublanes x L lanes  ->  multiple of 1024 samples.
    bt = max_tile if B >= max_tile else _round_up(B, 1024)
    b_pad = _round_up(B, bt)
    L = bt // 8
    cols = b_pad // 8

    # Single lane-major rearrangement: (B,1,8,8) -> (64, 8, cols); batch b maps
    # to (s, c) = (b // cols, b % cols).  Pad samples are zeros (harmless).
    xs = x.reshape(B, 64).astype(jnp.float32)
    if b_pad != B:
        xs = jnp.pad(xs, ((0, b_pad - B), (0, 0)))
    xt = xs.T.reshape(64, 8, cols)

    # Pack every parameter into one SMEM scalar table.
    p = jnp.concatenate([
        params["conv1_w"].reshape(4),
        params["conv2_w"].reshape(4),
        params["conn1_w"].reshape(12),
        params["conn1_b"].reshape(3),
        params["conn2_w"].reshape(6),
        params["conn2_b"].reshape(2),
    ]).astype(jnp.float32)                       # (31,)

    out_slab = jax.ShapeDtypeStruct((2, 8, cols), jnp.float32)
    cls3, raw3 = pl.pallas_call(
        convs4x44_kernel,
        out_shape=(out_slab, out_slab),
        grid=(b_pad // bt,),
        in_specs=[
            pl.BlockSpec(memory_space=pltpu.MemorySpace.SMEM),       # params
            pl.BlockSpec((64, 8, L), lambda i: (0, 0, i)),           # images
        ],
        out_specs=(
            pl.BlockSpec((2, 8, L), lambda i: (0, 0, i)),
            pl.BlockSpec((2, 8, L), lambda i: (0, 0, i)),
        ),
        compiler_params=pltpu.CompilerParams(
            dimension_semantics=("parallel",),
        ),
    )(p, xt)

    # Undo the lane-major layout: (2, 8, cols) -> (B, 2).
    cls = cls3.reshape(2, b_pad).T[:B]
    raw = raw3.reshape(2, b_pad).T[:B]
    return cls, raw


def reference_forward(x, params):
    """Pure-JAX reference matching the PyTorch module semantics."""
    B = x.shape[0]
    w1 = params["conv1_w"][0, 0]
    w2 = params["conv2_w"][0, 0]
    xs = x[:, 0]
    x1 = sum(w1[di, dj] * xs[:, di::2, dj::2] for di in range(2) for dj in range(2))
    x1 = jnp.maximum(x1 - 0.2, 0.0)                           # (B, 4, 4)
    x2 = sum(w2[a, b] * x1[:, a::2, b::2] for a in range(2) for b in range(2))
    v = jnp.maximum(x2.reshape(B, 4) - 2.0, 0.0)              # (B, 4)
    h = jnp.maximum(v @ params["conn1_w"].T + params["conn1_b"], 0.0)
    out = h @ params["conn2_w"].T + params["conn2_b"]         # (B, 2)
    e = jnp.exp(out - jnp.max(out, axis=-1, keepdims=True))
    return e / jnp.sum(e, axis=-1, keepdims=True), out


def init_params(key):
    ks = jax.random.split(key, 6)
    # torch.nn.init.normal_(w, 0.5, 0.15) equivalents (deterministic, synthetic)
    return {
        "conv1_w": 0.5 + 0.15 * jax.random.normal(ks[0], (1, 1, 2, 2), jnp.float32),
        "conv2_w": 0.5 + 0.15 * jax.random.normal(ks[1], (1, 1, 2, 2), jnp.float32),
        "conn1_w": 0.5 + 0.15 * jax.random.normal(ks[2], (3, 4), jnp.float32),
        "conn1_b": 0.1 * jax.random.normal(ks[3], (3,), jnp.float32),
        "conn2_w": 0.5 + 0.15 * jax.random.normal(ks[4], (2, 3), jnp.float32),
        "conn2_b": 0.1 * jax.random.normal(ks[5], (2,), jnp.float32),
    }


if __name__ == "__main__":
    key = jax.random.PRNGKey(0)
    k_x, k_p = jax.random.split(key)
    params = init_params(k_p)

    # Forward requires an 8x8 single-channel image (conv->conv leaves 2x2 = 4 elems).
    B = 2
    x = 1.0 + jax.random.normal(k_x, (B, 1, 8, 8), jnp.float32)

    cls, raw = jax.block_until_ready(convs4x44_forward(x, params))
    ref_cls, ref_raw = reference_forward(x, params)

    assert cls.shape == (B, 2) and raw.shape == (B, 2)
    assert jnp.allclose(raw, ref_raw, atol=1e-3, rtol=1e-3)
    assert jnp.allclose(cls, ref_cls, atol=1e-3, rtol=1e-3)
    print("KERNEL_OK")
</pallas_src>

<mosaic_0001>
module attributes {stable_mosaic.version = 11 : i64} {
  func.func @convs4x44_kernel(%arg0: i32, %arg1: memref<31xf32, #tpu.memory_space<smem>>, %arg2: memref<64x8x128xf32, #tpu.memory_space<vmem>>, %arg3: memref<2x8x128xf32, #tpu.memory_space<vmem>>, %arg4: memref<2x8x128xf32, #tpu.memory_space<vmem>>) attributes {dimension_semantics = [#tpu.dimension_semantics<parallel>], iteration_bounds = array<i64: 1>, scalar_prefetch = 0 : i64, scratch_operands = 0 : i64, tpu.core_type = #tpu.core_type<tc>, window_params = [{transform_indices = @transform_0, window_bounds = array<i64: 31>}, {transform_indices = @transform_1, window_bounds = array<i64: 64, 8, 128>}, {transform_indices = @transform_2, window_bounds = array<i64: 2, 8, 128>}, {transform_indices = @transform_3, window_bounds = array<i64: 2, 8, 128>}]} {
    %c0 = arith.constant 0 : index
    %0 = memref.load %arg1[%c0] : memref<31xf32, #tpu.memory_space<smem>>
    %c1 = arith.constant 1 : index
    %1 = memref.load %arg1[%c1] : memref<31xf32, #tpu.memory_space<smem>>
    %c2 = arith.constant 2 : index
    %2 = memref.load %arg1[%c2] : memref<31xf32, #tpu.memory_space<smem>>
    %c3 = arith.constant 3 : index
    %3 = memref.load %arg1[%c3] : memref<31xf32, #tpu.memory_space<smem>>
    %c4 = arith.constant 4 : index
    %4 = memref.load %arg1[%c4] : memref<31xf32, #tpu.memory_space<smem>>
    %c5 = arith.constant 5 : index
    %5 = memref.load %arg1[%c5] : memref<31xf32, #tpu.memory_space<smem>>
    %c6 = arith.constant 6 : index
    %6 = memref.load %arg1[%c6] : memref<31xf32, #tpu.memory_space<smem>>
    %c7 = arith.constant 7 : index
    %7 = memref.load %arg1[%c7] : memref<31xf32, #tpu.memory_space<smem>>
    %c0_0 = arith.constant 0 : index
    %c0_1 = arith.constant 0 : index
    %c0_2 = arith.constant 0 : index
    %8 = vector.load %arg2[%c0_0, %c0_1, %c0_2] : memref<64x8x128xf32, #tpu.memory_space<vmem>>, vector<1x8x128xf32>
    %9 = vector.shape_cast %8 : vector<1x8x128xf32> to vector<8x128xf32>
    %10 = vector.broadcast %0 : f32 to vector<8x128xf32>
    %11 = arith.mulf %10, %9 : vector<8x128xf32>
    %c1_3 = arith.constant 1 : index
    %c0_4 = arith.constant 0 : index
    %c0_5 = arith.constant 0 : index
    %12 = vector.load %arg2[%c1_3, %c0_4, %c0_5] : memref<64x8x128xf32, #tpu.memory_space<vmem>>, vector<1x8x128xf32>
    %13 = vector.shape_cast %12 : vector<1x8x128xf32> to vector<8x128xf32>
    %14 = vector.broadcast %1 : f32 to vector<8x128xf32>
    %15 = arith.mulf %14, %13 : vector<8x128xf32>
    %16 = arith.addf %11, %15 : vector<8x128xf32>
    %c8 = arith.constant 8 : index
    %c0_6 = arith.constant 0 : index
    %c0_7 = arith.constant 0 : index
    %17 = vector.load %arg2[%c8, %c0_6, %c0_7] : memref<64x8x128xf32, #tpu.memory_space<vmem>>, vector<1x8x128xf32>
    %18 = vector.shape_cast %17 : vector<1x8x128xf32> to vector<8x128xf32>
    %19 = vector.broadcast %2 : f32 to vector<8x128xf32>
    %20 = arith.mulf %19, %18 : vector<8x128xf32>
    %21 = arith.addf %16, %20 : vector<8x128xf32>
    %c9 = arith.constant 9 : index
    %c0_8 = arith.constant 0 : index
    %c0_9 = arith.constant 0 : index
    %22 = vector.load %arg2[%c9, %c0_8, %c0_9] : memref<64x8x128xf32, #tpu.memory_space<vmem>>, vector<1x8x128xf32>
    %23 = vector.shape_cast %22 : vector<1x8x128xf32> to vector<8x128xf32>
    %24 = vector.broadcast %3 : f32 to vector<8x128xf32>
    %25 = arith.mulf %24, %23 : vector<8x128xf32>
    %26 = arith.addf %21, %25 : vector<8x128xf32>
    %cst = arith.constant 2.000000e-01 : f32
    %27 = vector.broadcast %cst : f32 to vector<8x128xf32>
    %28 = arith.subf %26, %27 : vector<8x128xf32>
    %cst_10 = arith.constant 0.000000e+00 : f32
    %29 = vector.broadcast %cst_10 : f32 to vector<8x128xf32>
    %30 = arith.maximumf %28, %29 : vector<8x128xf32>
    %31 = vector.broadcast %4 : f32 to vector<8x128xf32>
    %32 = arith.mulf %31, %30 : vector<8x128xf32>
    %c2_11 = arith.constant 2 : index
    %c0_12 = arith.constant 0 : index
    %c0_13 = arith.constant 0 : index
    %33 = vector.load %arg2[%c2_11, %c0_12, %c0_13] : memref<64x8x128xf32, #tpu.memory_space<vmem>>, vector<1x8x128xf32>
    %34 = vector.shape_cast %33 : vector<1x8x128xf32> to vector<8x128xf32>
    %35 = vector.broadcast %0 : f32 to vector<8x128xf32>
    %36 = arith.mulf %35, %34 : vector<8x128xf32>
    %c3_14 = arith.constant 3 : index
    %c0_15 = arith.constant 0 : index
    %c0_16 = arith.constant 0 : index
    %37 = vector.load %arg2[%c3_14, %c0_15, %c0_16] : memref<64x8x128xf32, #tpu.memory_space<vmem>>, vector<1x8x128xf32>
    %38 = vector.shape_cast %37 : vector<1x8x128xf32> to vector<8x128xf32>
    %39 = vector.broadcast %1 : f32 to vector<8x128xf32>
    %40 = arith.mulf %39, %38 : vector<8x128xf32>
    %41 = arith.addf %36, %40 : vector<8x128xf32>
    %c10 = arith.constant 10 : index
    %c0_17 = arith.constant 0 : index
    %c0_18 = arith.constant 0 : index
    %42 = vector.load %arg2[%c10, %c0_17, %c0_18] : memref<64x8x128xf32, #tpu.memory_space<vmem>>, vector<1x8x128xf32>
    %43 = vector.shape_cast %42 : vector<1x8x128xf32> to vector<8x128xf32>
    %44 = vector.broadcast %2 : f32 to vector<8x128xf32>
    %45 = arith.mulf %44, %43 : vector<8x128xf32>
    %46 = arith.addf %41, %45 : vector<8x128xf32>
    %c11 = arith.constant 11 : index
    %c0_19 = arith.constant 0 : index
    %c0_20 = arith.constant 0 : index
    %47 = vector.load %arg2[%c11, %c0_19, %c0_20] : memref<64x8x128xf32, #tpu.memory_space<vmem>>, vector<1x8x128xf32>
    %48 = vector.shape_cast %47 : vector<1x8x128xf32> to vector<8x128xf32>
    %49 = vector.broadcast %3 : f32 to vector<8x128xf32>
    %50 = arith.mulf %49, %48 : vector<8x128xf32>
    %51 = arith.addf %46, %50 : vector<8x128xf32>
    %cst_21 = arith.constant 2.000000e-01 : f32
    %52 = vector.broadcast %cst_21 : f32 to vector<8x128xf32>
    %53 = arith.subf %51, %52 : vector<8x128xf32>
    %cst_22 = arith.constant 0.000000e+00 : f32
    %54 = vector.broadcast %cst_22 : f32 to vector<8x128xf32>
    %55 = arith.maximumf %53, %54 : vector<8x128xf32>
    %56 = vector.broadcast %5 : f32 to vector<8x128xf32>
    %57 = arith.mulf %56, %55 : vector<8x128xf32>
    %58 = arith.addf %32, %57 : vector<8x128xf32>
    %c16 = arith.constant 16 : index
    %c0_23 = arith.constant 0 : index
    %c0_24 = arith.constant 0 : index
    %59 = vector.load %arg2[%c16, %c0_23, %c0_24] : memref<64x8x128xf32, #tpu.memory_space<vmem>>, vector<1x8x128xf32>
    %60 = vector.shape_cast %59 : vector<1x8x128xf32> to vector<8x128xf32>
    %61 = vector.broadcast %0 : f32 to vector<8x128xf32>
    %62 = arith.mulf %61, %60 : vector<8x128xf32>
    %c17 = arith.constant 17 : index
    %c0_25 = arith.constant 0 : index
    %c0_26 = arith.constant 0 : index
    %63 = vector.load %arg2[%c17, %c0_25, %c0_26] : memref<64x8x128xf32, #tpu.memory_space<vmem>>, vector<1x8x128xf32>
    %64 = vector.shape_cast %63 : vector<1x8x128xf32> to vector<8x128xf32>
    %65 = vector.broadcast %1 : f32 to vector<8x128xf32>
    %66 = arith.mulf %65, %64 : vector<8x128xf32>
    %67 = arith.addf %62, %66 : vector<8x128xf32>
    %c24 = arith.constant 24 : index
    %c0_27 = arith.constant 0 : index
    %c0_28 = arith.constant 0 : index
    %68 = vector.load %arg2[%c24, %c0_27, %c0_28] : memref<64x8x128xf32, #tpu.memory_space<vmem>>, vector<1x8x128xf32>
    %69 = vector.shape_cast %68 : vector<1x8x128xf32> to vector<8x128xf32>
    %70 = vector.broadcast %2 : f32 to vector<8x128xf32>
    %71 = arith.mulf %70, %69 : vector<8x128xf32>
    %72 = arith.addf %67, %71 : vector<8x128xf32>
    %c25 = arith.constant 25 : index
    %c0_29 = arith.constant 0 : index
    %c0_30 = arith.constant 0 : index
    %73 = vector.load %arg2[%c25, %c0_29, %c0_30] : memref<64x8x128xf32, #tpu.memory_space<vmem>>, vector<1x8x128xf32>
    %74 = vector.shape_cast %73 : vector<1x8x128xf32> to vector<8x128xf32>
    %75 = vector.broadcast %3 : f32 to vector<8x128xf32>
    %76 = arith.mulf %75, %74 : vector<8x128xf32>
    %77 = arith.addf %72, %76 : vector<8x128xf32>
    %cst_31 = arith.constant 2.000000e-01 : f32
    %78 = vector.broadcast %cst_31 : f32 to vector<8x128xf32>
    %79 = arith.subf %77, %78 : vector<8x128xf32>
    %cst_32 = arith.constant 0.000000e+00 : f32
    %80 = vector.broadcast %cst_32 : f32 to vector<8x128xf32>
    %81 = arith.maximumf %79, %80 : vector<8x128xf32>
    %82 = vector.broadcast %6 : f32 to vector<8x128xf32>
    %83 = arith.mulf %82, %81 : vector<8x128xf32>
    %84 = arith.addf %58, %83 : vector<8x128xf32>
    %c18 = arith.constant 18 : index
    %c0_33 = arith.constant 0 : index
    %c0_34 = arith.constant 0 : index
    %85 = vector.load %arg2[%c18, %c0_33, %c0_34] : memref<64x8x128xf32, #tpu.memory_space<vmem>>, vector<1x8x128xf32>
    %86 = vector.shape_cast %85 : vector<1x8x128xf32> to vector<8x128xf32>
    %87 = vector.broadcast %0 : f32 to vector<8x128xf32>
    %88 = arith.mulf %87, %86 : vector<8x128xf32>
    %c19 = arith.constant 19 : index
    %c0_35 = arith.constant 0 : index
    %c0_36 = arith.constant 0 : index
    %89 = vector.load %arg2[%c19, %c0_35, %c0_36] : memref<64x8x128xf32, #tpu.memory_space<vmem>>, vector<1x8x128xf32>
    %90 = vector.shape_cast %89 : vector<1x8x128xf32> to vector<8x128xf32>
    %91 = vector.broadcast %1 : f32 to vector<8x128xf32>
    %92 = arith.mulf %91, %90 : vector<8x128xf32>
    %93 = arith.addf %88, %92 : vector<8x128xf32>
    %c26 = arith.constant 26 : index
    %c0_37 = arith.constant 0 : index
    %c0_38 = arith.constant 0 : index
    %94 = vector.load %arg2[%c26, %c0_37, %c0_38] : memref<64x8x128xf32, #tpu.memory_space<vmem>>, vector<1x8x128xf32>
    %95 = vector.shape_cast %94 : vector<1x8x128xf32> to vector<8x128xf32>
    %96 = vector.broadcast %2 : f32 to vector<8x128xf32>
    %97 = arith.mulf %96, %95 : vector<8x128xf32>
    %98 = arith.addf %93, %97 : vector<8x128xf32>
    %c27 = arith.constant 27 : index
    %c0_39 = arith.constant 0 : index
    %c0_40 = arith.constant 0 : index
    %99 = vector.load %arg2[%c27, %c0_39, %c0_40] : memref<64x8x128xf32, #tpu.memory_space<vmem>>, vector<1x8x128xf32>
    %100 = vector.shape_cast %99 : vector<1x8x128xf32> to vector<8x128xf32>
    %101 = vector.broadcast %3 : f32 to vector<8x128xf32>
    %102 = arith.mulf %101, %100 : vector<8x128xf32>
    %103 = arith.addf %98, %102 : vector<8x128xf32>
    %cst_41 = arith.constant 2.000000e-01 : f32
    %104 = vector.broadcast %cst_41 : f32 to vector<8x128xf32>
    %105 = arith.subf %103, %104 : vector<8x128xf32>
    %cst_42 = arith.constant 0.000000e+00 : f32
    %106 = vector.broadcast %cst_42 : f32 to vector<8x128xf32>
    %107 = arith.maximumf %105, %106 : vector<8x128xf32>
    %108 = vector.broadcast %7 : f32 to vector<8x128xf32>
    %109 = arith.mulf %108, %107 : vector<8x128xf32>
    %110 = arith.addf %84, %109 : vector<8x128xf32>
    %cst_43 = arith.constant 2.000000e+00 : f32
    %111 = vector.broadcast %cst_43 : f32 to vector<8x128xf32>
    %112 = arith.subf %110, %111 : vector<8x128xf32>
    %cst_44 = arith.constant 0.000000e+00 : f32
    %113 = vector.broadcast %cst_44 : f32 to vector<8x128xf32>
    %114 = arith.maximumf %112, %113 : vector<8x128xf32>
    %c4_45 = arith.constant 4 : index
    %c0_46 = arith.constant 0 : index
    %c0_47 = arith.constant 0 : index
    %115 = vector.load %arg2[%c4_45, %c0_46, %c0_47] : memref<64x8x128xf32, #tpu.memory_space<vmem>>, vector<1x8x128xf32>
    %116 = vector.shape_cast %115 : vector<1x8x128xf32> to vector<8x128xf32>
    %117 = vector.broadcast %0 : f32 to vector<8x128xf32>
    %118 = arith.mulf %117, %116 : vector<8x128xf32>
    %c5_48 = arith.constant 5 : index
    %c0_49 = arith.constant 0 : index
    %c0_50 = arith.constant 0 : index
    %119 = vector.load %arg2[%c5_48, %c0_49, %c0_50] : memref<64x8x128xf32, #tpu.memory_space<vmem>>, vector<1x8x128xf32>
    %120 = vector.shape_cast %119 : vector<1x8x128xf32> to vector<8x128xf32>
    %121 = vector.broadcast %1 : f32 to vector<8x128xf32>
    %122 = arith.mulf %121, %120 : vector<8x128xf32>
    %123 = arith.addf %118, %122 : vector<8x128xf32>
    %c12 = arith.constant 12 : index
    %c0_51 = arith.constant 0 : index
    %c0_52 = arith.constant 0 : index
    %124 = vector.load %arg2[%c12, %c0_51, %c0_52] : memref<64x8x128xf32, #tpu.memory_space<vmem>>, vector<1x8x128xf32>
    %125 = vector.shape_cast %124 : vector<1x8x128xf32> to vector<8x128xf32>
    %126 = vector.broadcast %2 : f32 to vector<8x128xf32>
    %127 = arith.mulf %126, %125 : vector<8x128xf32>
    %128 = arith.addf %123, %127 : vector<8x128xf32>
    %c13 = arith.constant 13 : index
    %c0_53 = arith.constant 0 : index
    %c0_54 = arith.constant 0 : index
    %129 = vector.load %arg2[%c13, %c0_53, %c0_54] : memref<64x8x128xf32, #tpu.memory_space<vmem>>, vector<1x8x128xf32>
    %130 = vector.shape_cast %129 : vector<1x8x128xf32> to vector<8x128xf32>
    %131 = vector.broadcast %3 : f32 to vector<8x128xf32>
    %132 = arith.mulf %131, %130 : vector<8x128xf32>
    %133 = arith.addf %128, %132 : vector<8x128xf32>
    %cst_55 = arith.constant 2.000000e-01 : f32
    %134 = vector.broadcast %cst_55 : f32 to vector<8x128xf32>
    %135 = arith.subf %133, %134 : vector<8x128xf32>
    %cst_56 = arith.constant 0.000000e+00 : f32
    %136 = vector.broadcast %cst_56 : f32 to vector<8x128xf32>
    %137 = arith.maximumf %135, %136 : vector<8x128xf32>
    %138 = vector.broadcast %4 : f32 to vector<8x128xf32>
    %139 = arith.mulf %138, %137 : vector<8x128xf32>
    %c6_57 = arith.constant 6 : index
    %c0_58 = arith.constant 0 : index
    %c0_59 = arith.constant 0 : index
    %140 = vector.load %arg2[%c6_57, %c0_58, %c0_59] : memref<64x8x128xf32, #tpu.memory_space<vmem>>, vector<1x8x128xf32>
    %141 = vector.shape_cast %140 : vector<1x8x128xf32> to vector<8x128xf32>
    %142 = vector.broadcast %0 : f32 to vector<8x128xf32>
    %143 = arith.mulf %142, %141 : vector<8x128xf32>
    %c7_60 = arith.constant 7 : index
    %c0_61 = arith.constant 0 : index
    %c0_62 = arith.constant 0 : index
    %144 = vector.load %arg2[%c7_60, %c0_61, %c0_62] : memref<64x8x128xf32, #tpu.memory_space<vmem>>, vector<1x8x128xf32>
    %145 = vector.shape_cast %144 : vector<1x8x128xf32> to vector<8x128xf32>
    %146 = vector.broadcast %1 : f32 to vector<8x128xf32>
    %147 = arith.mulf %146, %145 : vector<8x128xf32>
    %148 = arith.addf %143, %147 : vector<8x128xf32>
    %c14 = arith.constant 14 : index
    %c0_63 = arith.constant 0 : index
    %c0_64 = arith.constant 0 : index
    %149 = vector.load %arg2[%c14, %c0_63, %c0_64] : memref<64x8x128xf32, #tpu.memory_space<vmem>>, vector<1x8x128xf32>
    %150 = vector.shape_cast %149 : vector<1x8x128xf32> to vector<8x128xf32>
    %151 = vector.broadcast %2 : f32 to vector<8x128xf32>
    %152 = arith.mulf %151, %150 : vector<8x128xf32>
    %153 = arith.addf %148, %152 : vector<8x128xf32>
    %c15 = arith.constant 15 : index
    %c0_65 = arith.constant 0 : index
    %c0_66 = arith.constant 0 : index
    %154 = vector.load %arg2[%c15, %c0_65, %c0_66] : memref<64x8x128xf32, #tpu.memory_space<vmem>>, vector<1x8x128xf32>
    %155 = vector.shape_cast %154 : vector<1x8x128xf32> to vector<8x128xf32>
    %156 = vector.broadcast %3 : f32 to vector<8x128xf32>
    %157 = arith.mulf %156, %155 : vector<8x128xf32>
    %158 = arith.addf %153, %157 : vector<8x128xf32>
    %cst_67 = arith.constant 2.000000e-01 : f32
    %159 = vector.broadcast %cst_67 : f32 to vector<8x128xf32>
    %160 = arith.subf %158, %159 : vector<8x128xf32>
    %cst_68 = arith.constant 0.000000e+00 : f32
    %161 = vector.broadcast %cst_68 : f32 to vector<8x128xf32>
    %162 = arith.maximumf %160, %161 : vector<8x128xf32>
    %163 = vector.broadcast %5 : f32 to vector<8x128xf32>
    %164 = arith.mulf %163, %162 : vector<8x128xf32>
    %165 = arith.addf %139, %164 : vector<8x128xf32>
    %c20 = arith.constant 20 : index
    %c0_69 = arith.constant 0 : index
    %c0_70 = arith.constant 0 : index
    %166 = vector.load %arg2[%c20, %c0_69, %c0_70] : memref<64x8x128xf32, #tpu.memory_space<vmem>>, vector<1x8x128xf32>
    %167 = vector.shape_cast %166 : vector<1x8x128xf32> to vector<8x128xf32>
    %168 = vector.broadcast %0 : f32 to vector<8x128xf32>
    %169 = arith.mulf %168, %167 : vector<8x128xf32>
    %c21 = arith.constant 21 : index
    %c0_71 = arith.constant 0 : index
    %c0_72 = arith.constant 0 : index
    %170 = vector.load %arg2[%c21, %c0_71, %c0_72] : memref<64x8x128xf32, #tpu.memory_space<vmem>>, vector<1x8x128xf32>
    %171 = vector.shape_cast %170 : vector<1x8x128xf32> to vector<8x128xf32>
    %172 = vector.broadcast %1 : f32 to vector<8x128xf32>
    %173 = arith.mulf %172, %171 : vector<8x128xf32>
    %174 = arith.addf %169, %173 : vector<8x128xf32>
    %c28 = arith.constant 28 : index
    %c0_73 = arith.constant 0 : index
    %c0_74 = arith.constant 0 : index
    %175 = vector.load %arg2[%c28, %c0_73, %c0_74] : memref<64x8x128xf32, #tpu.memory_space<vmem>>, vector<1x8x128xf32>
    %176 = vector.shape_cast %175 : vector<1x8x128xf32> to vector<8x128xf32>
    %177 = vector.broadcast %2 : f32 to vector<8x128xf32>
    %178 = arith.mulf %177, %176 : vector<8x128xf32>
    %179 = arith.addf %174, %178 : vector<8x128xf32>
    %c29 = arith.constant 29 : index
    %c0_75 = arith.constant 0 : index
    %c0_76 = arith.constant 0 : index
    %180 = vector.load %arg2[%c29, %c0_75, %c0_76] : memref<64x8x128xf32, #tpu.memory_space<vmem>>, vector<1x8x128xf32>
    %181 = vector.shape_cast %180 : vector<1x8x128xf32> to vector<8x128xf32>
    %182 = vector.broadcast %3 : f32 to vector<8x128xf32>
    %183 = arith.mulf %182, %181 : vector<8x128xf32>
    %184 = arith.addf %179, %183 : vector<8x128xf32>
    %cst_77 = arith.constant 2.000000e-01 : f32
    %185 = vector.broadcast %cst_77 : f32 to vector<8x128xf32>
    %186 = arith.subf %184, %185 : vector<8x128xf32>
    %cst_78 = arith.constant 0.000000e+00 : f32
    %187 = vector.broadcast %cst_78 : f32 to vector<8x128xf32>
    %188 = arith.maximumf %186, %187 : vector<8x128xf32>
    %189 = vector.broadcast %6 : f32 to vector<8x128xf32>
    %190 = arith.mulf %189, %188 : vector<8x128xf32>
    %191 = arith.addf %165, %190 : vector<8x128xf32>
    %c22 = arith.constant 22 : index
    %c0_79 = arith.constant 0 : index
    %c0_80 = arith.constant 0 : index
    %192 = vector.load %arg2[%c22, %c0_79, %c0_80] : memref<64x8x128xf32, #tpu.memory_space<vmem>>, vector<1x8x128xf32>
    %193 = vector.shape_cast %192 : vector<1x8x128xf32> to vector<8x128xf32>
    %194 = vector.broadcast %0 : f32 to vector<8x128xf32>
    %195 = arith.mulf %194, %193 : vector<8x128xf32>
    %c23 = arith.constant 23 : index
    %c0_81 = arith.constant 0 : index
    %c0_82 = arith.constant 0 : index
    %196 = vector.load %arg2[%c23, %c0_81, %c0_82] : memref<64x8x128xf32, #tpu.memory_space<vmem>>, vector<1x8x128xf32>
    %197 = vector.shape_cast %196 : vector<1x8x128xf32> to vector<8x128xf32>
    %198 = vector.broadcast %1 : f32 to vector<8x128xf32>
    %199 = arith.mulf %198, %197 : vector<8x128xf32>
    %200 = arith.addf %195, %199 : vector<8x128xf32>
    %c30 = arith.constant 30 : index
    %c0_83 = arith.constant 0 : index
    %c0_84 = arith.constant 0 : index
    %201 = vector.load %arg2[%c30, %c0_83, %c0_84] : memref<64x8x128xf32, #tpu.memory_space<vmem>>, vector<1x8x128xf32>
    %202 = vector.shape_cast %201 : vector<1x8x128xf32> to vector<8x128xf32>
    %203 = vector.broadcast %2 : f32 to vector<8x128xf32>
    %204 = arith.mulf %203, %202 : vector<8x128xf32>
    %205 = arith.addf %200, %204 : vector<8x128xf32>
    %c31 = arith.constant 31 : index
    %c0_85 = arith.constant 0 : index
    %c0_86 = arith.constant 0 : index
    %206 = vector.load %arg2[%c31, %c0_85, %c0_86] : memref<64x8x128xf32, #tpu.memory_space<vmem>>, vector<1x8x128xf32>
    %207 = vector.shape_cast %206 : vector<1x8x128xf32> to vector<8x128xf32>
    %208 = vector.broadcast %3 : f32 to vector<8x128xf32>
    %209 = arith.mulf %208, %207 : vector<8x128xf32>
    %210 = arith.addf %205, %209 : vector<8x128xf32>
    %cst_87 = arith.constant 2.000000e-01 : f32
    %211 = vector.broadcast %cst_87 : f32 to vector<8x128xf32>
    %212 = arith.subf %210, %211 : vector<8x128xf32>
    %cst_88 = arith.constant 0.000000e+00 : f32
    %213 = vector.broadcast %cst_88 : f32 to vector<8x128xf32>
    %214 = arith.maximumf %212, %213 : vector<8x128xf32>
    %215 = vector.broadcast %7 : f32 to vector<8x128xf32>
    %216 = arith.mulf %215, %214 : vector<8x128xf32>
    %217 = arith.addf %191, %216 : vector<8x128xf32>
    %cst_89 = arith.constant 2.000000e+00 : f32
    %218 = vector.broadcast %cst_89 : f32 to vector<8x128xf32>
    %219 = arith.subf %217, %218 : vector<8x128xf32>
    %cst_90 = arith.constant 0.000000e+00 : f32
    %220 = vector.broadcast %cst_90 : f32 to vector<8x128xf32>
    %221 = arith.maximumf %219, %220 : vector<8x128xf32>
    %c32 = arith.constant 32 : index
    %c0_91 = arith.constant 0 : index
    %c0_92 = arith.constant 0 : index
    %222 = vector.load %arg2[%c32, %c0_91, %c0_92] : memref<64x8x128xf32, #tpu.memory_space<vmem>>, vector<1x8x128xf32>
    %223 = vector.shape_cast %222 : vector<1x8x128xf32> to vector<8x128xf32>
    %224 = vector.broadcast %0 : f32 to vector<8x128xf32>
    %225 = arith.mulf %224, %223 : vector<8x128xf32>
    %c33 = arith.constant 33 : index
    %c0_93 = arith.constant 0 : index
    %c0_94 = arith.constant 0 : index
    %226 = vector.load %arg2[%c33, %c0_93, %c0_94] : memref<64x8x128xf32, #tpu.memory_space<vmem>>, vector<1x8x128xf32>
    %227 = vector.shape_cast %226 : vector<1x8x128xf32> to vector<8x128xf32>
    %228 = vector.broadcast %1 : f32 to vector<8x128xf32>
    %229 = arith.mulf %228, %227 : vector<8x128xf32>
    %230 = arith.addf %225, %229 : vector<8x128xf32>
    %c40 = arith.constant 40 : index
    %c0_95 = arith.constant 0 : index
    %c0_96 = arith.constant 0 : index
    %231 = vector.load %arg2[%c40, %c0_95, %c0_96] : memref<64x8x128xf32, #tpu.memory_space<vmem>>, vector<1x8x128xf32>
    %232 = vector.shape_cast %231 : vector<1x8x128xf32> to vector<8x128xf32>
    %233 = vector.broadcast %2 : f32 to vector<8x128xf32>
    %234 = arith.mulf %233, %232 : vector<8x128xf32>
    %235 = arith.addf %230, %234 : vector<8x128xf32>
    %c41 = arith.constant 41 : index
    %c0_97 = arith.constant 0 : index
    %c0_98 = arith.constant 0 : index
    %236 = vector.load %arg2[%c41, %c0_97, %c0_98] : memref<64x8x128xf32, #tpu.memory_space<vmem>>, vector<1x8x128xf32>
    %237 = vector.shape_cast %236 : vector<1x8x128xf32> to vector<8x128xf32>
    %238 = vector.broadcast %3 : f32 to vector<8x128xf32>
    %239 = arith.mulf %238, %237 : vector<8x128xf32>
    %240 = arith.addf %235, %239 : vector<8x128xf32>
    %cst_99 = arith.constant 2.000000e-01 : f32
    %241 = vector.broadcast %cst_99 : f32 to vector<8x128xf32>
    %242 = arith.subf %240, %241 : vector<8x128xf32>
    %cst_100 = arith.constant 0.000000e+00 : f32
    %243 = vector.broadcast %cst_100 : f32 to vector<8x128xf32>
    %244 = arith.maximumf %242, %243 : vector<8x128xf32>
    %245 = vector.broadcast %4 : f32 to vector<8x128xf32>
    %246 = arith.mulf %245, %244 : vector<8x128xf32>
    %c34 = arith.constant 34 : index
    %c0_101 = arith.constant 0 : index
    %c0_102 = arith.constant 0 : index
    %247 = vector.load %arg2[%c34, %c0_101, %c0_102] : memref<64x8x128xf32, #tpu.memory_space<vmem>>, vector<1x8x128xf32>
    %248 = vector.shape_cast %247 : vector<1x8x128xf32> to vector<8x128xf32>
    %249 = vector.broadcast %0 : f32 to vector<8x128xf32>
    %250 = arith.mulf %249, %248 : vector<8x128xf32>
    %c35 = arith.constant 35 : index
    %c0_103 = arith.constant 0 : index
    %c0_104 = arith.constant 0 : index
    %251 = vector.load %arg2[%c35, %c0_103, %c0_104] : memref<64x8x128xf32, #tpu.memory_space<vmem>>, vector<1x8x128xf32>
    %252 = vector.shape_cast %251 : vector<1x8x128xf32> to vector<8x128xf32>
    %253 = vector.broadcast %1 : f32 to vector<8x128xf32>
    %254 = arith.mulf %253, %252 : vector<8x128xf32>
    %255 = arith.addf %250, %254 : vector<8x128xf32>
    %c42 = arith.constant 42 : index
    %c0_105 = arith.constant 0 : index
    %c0_106 = arith.constant 0 : index
    %256 = vector.load %arg2[%c42, %c0_105, %c0_106] : memref<64x8x128xf32, #tpu.memory_space<vmem>>, vector<1x8x128xf32>
    %257 = vector.shape_cast %256 : vector<1x8x128xf32> to vector<8x128xf32>
    %258 = vector.broadcast %2 : f32 to vector<8x128xf32>
    %259 = arith.mulf %258, %257 : vector<8x128xf32>
    %260 = arith.addf %255, %259 : vector<8x128xf32>
    %c43 = arith.constant 43 : index
    %c0_107 = arith.constant 0 : index
    %c0_108 = arith.constant 0 : index
    %261 = vector.load %arg2[%c43, %c0_107, %c0_108] : memref<64x8x128xf32, #tpu.memory_space<vmem>>, vector<1x8x128xf32>
    %262 = vector.shape_cast %261 : vector<1x8x128xf32> to vector<8x128xf32>
    %263 = vector.broadcast %3 : f32 to vector<8x128xf32>
    %264 = arith.mulf %263, %262 : vector<8x128xf32>
    %265 = arith.addf %260, %264 : vector<8x128xf32>
    %cst_109 = arith.constant 2.000000e-01 : f32
    %266 = vector.broadcast %cst_109 : f32 to vector<8x128xf32>
    %267 = arith.subf %265, %266 : vector<8x128xf32>
    %cst_110 = arith.constant 0.000000e+00 : f32
    %268 = vector.broadcast %cst_110 : f32 to vector<8x128xf32>
    %269 = arith.maximumf %267, %268 : vector<8x128xf32>
    %270 = vector.broadcast %5 : f32 to vector<8x128xf32>
    %271 = arith.mulf %270, %269 : vector<8x128xf32>
    %272 = arith.addf %246, %271 : vector<8x128xf32>
    %c48 = arith.constant 48 : index
    %c0_111 = arith.constant 0 : index
    %c0_112 = arith.constant 0 : index
    %273 = vector.load %arg2[%c48, %c0_111, %c0_112] : memref<64x8x128xf32, #tpu.memory_space<vmem>>, vector<1x8x128xf32>
    %274 = vector.shape_cast %273 : vector<1x8x128xf32> to vector<8x128xf32>
    %275 = vector.broadcast %0 : f32 to vector<8x128xf32>
    %276 = arith.mulf %275, %274 : vector<8x128xf32>
    %c49 = arith.constant 49 : index
    %c0_113 = arith.constant 0 : index
    %c0_114 = arith.constant 0 : index
    %277 = vector.load %arg2[%c49, %c0_113, %c0_114] : memref<64x8x128xf32, #tpu.memory_space<vmem>>, vector<1x8x128xf32>
    %278 = vector.shape_cast %277 : vector<1x8x128xf32> to vector<8x128xf32>
    %279 = vector.broadcast %1 : f32 to vector<8x128xf32>
    %280 = arith.mulf %279, %278 : vector<8x128xf32>
    %281 = arith.addf %276, %280 : vector<8x128xf32>
    %c56 = arith.constant 56 : index
    %c0_115 = arith.constant 0 : index
    %c0_116 = arith.constant 0 : index
    %282 = vector.load %arg2[%c56, %c0_115, %c0_116] : memref<64x8x128xf32, #tpu.memory_space<vmem>>, vector<1x8x128xf32>
    %283 = vector.shape_cast %282 : vector<1x8x128xf32> to vector<8x128xf32>
    %284 = vector.broadcast %2 : f32 to vector<8x128xf32>
    %285 = arith.mulf %284, %283 : vector<8x128xf32>
    %286 = arith.addf %281, %285 : vector<8x128xf32>
    %c57 = arith.constant 57 : index
    %c0_117 = arith.constant 0 : index
    %c0_118 = arith.constant 0 : index
    %287 = vector.load %arg2[%c57, %c0_117, %c0_118] : memref<64x8x128xf32, #tpu.memory_space<vmem>>, vector<1x8x128xf32>
    %288 = vector.shape_cast %287 : vector<1x8x128xf32> to vector<8x128xf32>
    %289 = vector.broadcast %3 : f32 to vector<8x128xf32>
    %290 = arith.mulf %289, %288 : vector<8x128xf32>
    %291 = arith.addf %286, %290 : vector<8x128xf32>
    %cst_119 = arith.constant 2.000000e-01 : f32
    %292 = vector.broadcast %cst_119 : f32 to vector<8x128xf32>
    %293 = arith.subf %291, %292 : vector<8x128xf32>
    %cst_120 = arith.constant 0.000000e+00 : f32
    %294 = vector.broadcast %cst_120 : f32 to vector<8x128xf32>
    %295 = arith.maximumf %293, %294 : vector<8x128xf32>
    %296 = vector.broadcast %6 : f32 to vector<8x128xf32>
    %297 = arith.mulf %296, %295 : vector<8x128xf32>
    %298 = arith.addf %272, %297 : vector<8x128xf32>
    %c50 = arith.constant 50 : index
    %c0_121 = arith.constant 0 : index
    %c0_122 = arith.constant 0 : index
    %299 = vector.load %arg2[%c50, %c0_121, %c0_122] : memref<64x8x128xf32, #tpu.memory_space<vmem>>, vector<1x8x128xf32>
    %300 = vector.shape_cast %299 : vector<1x8x128xf32> to vector<8x128xf32>
    %301 = vector.broadcast %0 : f32 to vector<8x128xf32>
    %302 = arith.mulf %301, %300 : vector<8x128xf32>
    %c51 = arith.constant 51 : index
    %c0_123 = arith.constant 0 : index
    %c0_124 = arith.constant 0 : index
    %303 = vector.load %arg2[%c51, %c0_123, %c0_124] : memref<64x8x128xf32, #tpu.memory_space<vmem>>, vector<1x8x128xf32>
    %304 = vector.shape_cast %303 : vector<1x8x128xf32> to vector<8x128xf32>
    %305 = vector.broadcast %1 : f32 to vector<8x128xf32>
    %306 = arith.mulf %305, %304 : vector<8x128xf32>
    %307 = arith.addf %302, %306 : vector<8x128xf32>
    %c58 = arith.constant 58 : index
    %c0_125 = arith.constant 0 : index
    %c0_126 = arith.constant 0 : index
    %308 = vector.load %arg2[%c58, %c0_125, %c0_126] : memref<64x8x128xf32, #tpu.memory_space<vmem>>, vector<1x8x128xf32>
    %309 = vector.shape_cast %308 : vector<1x8x128xf32> to vector<8x128xf32>
    %310 = vector.broadcast %2 : f32 to vector<8x128xf32>
    %311 = arith.mulf %310, %309 : vector<8x128xf32>
    %312 = arith.addf %307, %311 : vector<8x128xf32>
    %c59 = arith.constant 59 : index
    %c0_127 = arith.constant 0 : index
    %c0_128 = arith.constant 0 : index
    %313 = vector.load %arg2[%c59, %c0_127, %c0_128] : memref<64x8x128xf32, #tpu.memory_space<vmem>>, vector<1x8x128xf32>
    %314 = vector.shape_cast %313 : vector<1x8x128xf32> to vector<8x128xf32>
    %315 = vector.broadcast %3 : f32 to vector<8x128xf32>
    %316 = arith.mulf %315, %314 : vector<8x128xf32>
    %317 = arith.addf %312, %316 : vector<8x128xf32>
    %cst_129 = arith.constant 2.000000e-01 : f32
    %318 = vector.broadcast %cst_129 : f32 to vector<8x128xf32>
    %319 = arith.subf %317, %318 : vector<8x128xf32>
    %cst_130 = arith.constant 0.000000e+00 : f32
    %320 = vector.broadcast %cst_130 : f32 to vector<8x128xf32>
    %321 = arith.maximumf %319, %320 : vector<8x128xf32>
    %322 = vector.broadcast %7 : f32 to vector<8x128xf32>
    %323 = arith.mulf %322, %321 : vector<8x128xf32>
    %324 = arith.addf %298, %323 : vector<8x128xf32>
    %cst_131 = arith.constant 2.000000e+00 : f32
    %325 = vector.broadcast %cst_131 : f32 to vector<8x128xf32>
    %326 = arith.subf %324, %325 : vector<8x128xf32>
    %cst_132 = arith.constant 0.000000e+00 : f32
    %327 = vector.broadcast %cst_132 : f32 to vector<8x128xf32>
    %328 = arith.maximumf %326, %327 : vector<8x128xf32>
    %c36 = arith.constant 36 : index
    %c0_133 = arith.constant 0 : index
    %c0_134 = arith.constant 0 : index
    %329 = vector.load %arg2[%c36, %c0_133, %c0_134] : memref<64x8x128xf32, #tpu.memory_space<vmem>>, vector<1x8x128xf32>
    %330 = vector.shape_cast %329 : vector<1x8x128xf32> to vector<8x128xf32>
    %331 = vector.broadcast %0 : f32 to vector<8x128xf32>
    %332 = arith.mulf %331, %330 : vector<8x128xf32>
    %c37 = arith.constant 37 : index
    %c0_135 = arith.constant 0 : index
    %c0_136 = arith.constant 0 : index
    %333 = vector.load %arg2[%c37, %c0_135, %c0_136] : memref<64x8x128xf32, #tpu.memory_space<vmem>>, vector<1x8x128xf32>
    %334 = vector.shape_cast %333 : vector<1x8x128xf32> to vector<8x128xf32>
    %335 = vector.broadcast %1 : f32 to vector<8x128xf32>
    %336 = arith.mulf %335, %334 : vector<8x128xf32>
    %337 = arith.addf %332, %336 : vector<8x128xf32>
    %c44 = arith.constant 44 : index
    %c0_137 = arith.constant 0 : index
    %c0_138 = arith.constant 0 : index
    %338 = vector.load %arg2[%c44, %c0_137, %c0_138] : memref<64x8x128xf32, #tpu.memory_space<vmem>>, vector<1x8x128xf32>
    %339 = vector.shape_cast %338 : vector<1x8x128xf32> to vector<8x128xf32>
    %340 = vector.broadcast %2 : f32 to vector<8x128xf32>
    %341 = arith.mulf %340, %339 : vector<8x128xf32>
    %342 = arith.addf %337, %341 : vector<8x128xf32>
    %c45 = arith.constant 45 : index
    %c0_139 = arith.constant 0 : index
    %c0_140 = arith.constant 0 : index
    %343 = vector.load %arg2[%c45, %c0_139, %c0_140] : memref<64x8x128xf32, #tpu.memory_space<vmem>>, vector<1x8x128xf32>
    %344 = vector.shape_cast %343 : vector<1x8x128xf32> to vector<8x128xf32>
    %345 = vector.broadcast %3 : f32 to vector<8x128xf32>
    %346 = arith.mulf %345, %344 : vector<8x128xf32>
    %347 = arith.addf %342, %346 : vector<8x128xf32>
    %cst_141 = arith.constant 2.000000e-01 : f32
    %348 = vector.broadcast %cst_141 : f32 to vector<8x128xf32>
    %349 = arith.subf %347, %348 : vector<8x128xf32>
    %cst_142 = arith.constant 0.000000e+00 : f32
    %350 = vector.broadcast %cst_142 : f32 to vector<8x128xf32>
    %351 = arith.maximumf %349, %350 : vector<8x128xf32>
    %352 = vector.broadcast %4 : f32 to vector<8x128xf32>
    %353 = arith.mulf %352, %351 : vector<8x128xf32>
    %c38 = arith.constant 38 : index
    %c0_143 = arith.constant 0 : index
    %c0_144 = arith.constant 0 : index
    %354 = vector.load %arg2[%c38, %c0_143, %c0_144] : memref<64x8x128xf32, #tpu.memory_space<vmem>>, vector<1x8x128xf32>
    %355 = vector.shape_cast %354 : vector<1x8x128xf32> to vector<8x128xf32>
    %356 = vector.broadcast %0 : f32 to vector<8x128xf32>
    %357 = arith.mulf %356, %355 : vector<8x128xf32>
    %c39 = arith.constant 39 : index
    %c0_145 = arith.constant 0 : index
    %c0_146 = arith.constant 0 : index
    %358 = vector.load %arg2[%c39, %c0_145, %c0_146] : memref<64x8x128xf32, #tpu.memory_space<vmem>>, vector<1x8x128xf32>
    %359 = vector.shape_cast %358 : vector<1x8x128xf32> to vector<8x128xf32>
    %360 = vector.broadcast %1 : f32 to vector<8x128xf32>
    %361 = arith.mulf %360, %359 : vector<8x128xf32>
    %362 = arith.addf %357, %361 : vector<8x128xf32>
    %c46 = arith.constant 46 : index
    %c0_147 = arith.constant 0 : index
    %c0_148 = arith.constant 0 : index
    %363 = vector.load %arg2[%c46, %c0_147, %c0_148] : memref<64x8x128xf32, #tpu.memory_space<vmem>>, vector<1x8x128xf32>
    %364 = vector.shape_cast %363 : vector<1x8x128xf32> to vector<8x128xf32>
    %365 = vector.broadcast %2 : f32 to vector<8x128xf32>
    %366 = arith.mulf %365, %364 : vector<8x128xf32>
    %367 = arith.addf %362, %366 : vector<8x128xf32>
    %c47 = arith.constant 47 : index
    %c0_149 = arith.constant 0 : index
    %c0_150 = arith.constant 0 : index
    %368 = vector.load %arg2[%c47, %c0_149, %c0_150] : memref<64x8x128xf32, #tpu.memory_space<vmem>>, vector<1x8x128xf32>
    %369 = vector.shape_cast %368 : vector<1x8x128xf32> to vector<8x128xf32>
    %370 = vector.broadcast %3 : f32 to vector<8x128xf32>
    %371 = arith.mulf %370, %369 : vector<8x128xf32>
    %372 = arith.addf %367, %371 : vector<8x128xf32>
    %cst_151 = arith.constant 2.000000e-01 : f32
    %373 = vector.broadcast %cst_151 : f32 to vector<8x128xf32>
    %374 = arith.subf %372, %373 : vector<8x128xf32>
    %cst_152 = arith.constant 0.000000e+00 : f32
    %375 = vector.broadcast %cst_152 : f32 to vector<8x128xf32>
    %376 = arith.maximumf %374, %375 : vector<8x128xf32>
    %377 = vector.broadcast %5 : f32 to vector<8x128xf32>
    %378 = arith.mulf %377, %376 : vector<8x128xf32>
    %379 = arith.addf %353, %378 : vector<8x128xf32>
    %c52 = arith.constant 52 : index
    %c0_153 = arith.constant 0 : index
    %c0_154 = arith.constant 0 : index
    %380 = vector.load %arg2[%c52, %c0_153, %c0_154] : memref<64x8x128xf32, #tpu.memory_space<vmem>>, vector<1x8x128xf32>
    %381 = vector.shape_cast %380 : vector<1x8x128xf32> to vector<8x128xf32>
    %382 = vector.broadcast %0 : f32 to vector<8x128xf32>
    %383 = arith.mulf %382, %381 : vector<8x128xf32>
    %c53 = arith.constant 53 : index
    %c0_155 = arith.constant 0 : index
    %c0_156 = arith.constant 0 : index
    %384 = vector.load %arg2[%c53, %c0_155, %c0_156] : memref<64x8x128xf32, #tpu.memory_space<vmem>>, vector<1x8x128xf32>
    %385 = vector.shape_cast %384 : vector<1x8x128xf32> to vector<8x128xf32>
    %386 = vector.broadcast %1 : f32 to vector<8x128xf32>
    %387 = arith.mulf %386, %385 : vector<8x128xf32>
    %388 = arith.addf %383, %387 : vector<8x128xf32>
    %c60 = arith.constant 60 : index
    %c0_157 = arith.constant 0 : index
    %c0_158 = arith.constant 0 : index
    %389 = vector.load %arg2[%c60, %c0_157, %c0_158] : memref<64x8x128xf32, #tpu.memory_space<vmem>>, vector<1x8x128xf32>
    %390 = vector.shape_cast %389 : vector<1x8x128xf32> to vector<8x128xf32>
    %391 = vector.broadcast %2 : f32 to vector<8x128xf32>
    %392 = arith.mulf %391, %390 : vector<8x128xf32>
    %393 = arith.addf %388, %392 : vector<8x128xf32>
    %c61 = arith.constant 61 : index
    %c0_159 = arith.constant 0 : index
    %c0_160 = arith.constant 0 : index
    %394 = vector.load %arg2[%c61, %c0_159, %c0_160] : memref<64x8x128xf32, #tpu.memory_space<vmem>>, vector<1x8x128xf32>
    %395 = vector.shape_cast %394 : vector<1x8x128xf32> to vector<8x128xf32>
    %396 = vector.broadcast %3 : f32 to vector<8x128xf32>
    %397 = arith.mulf %396, %395 : vector<8x128xf32>
    %398 = arith.addf %393, %397 : vector<8x128xf32>
    %cst_161 = arith.constant 2.000000e-01 : f32
    %399 = vector.broadcast %cst_161 : f32 to vector<8x128xf32>
    %400 = arith.subf %398, %399 : vector<8x128xf32>
    %cst_162 = arith.constant 0.000000e+00 : f32
    %401 = vector.broadcast %cst_162 : f32 to vector<8x128xf32>
    %402 = arith.maximumf %400, %401 : vector<8x128xf32>
    %403 = vector.broadcast %6 : f32 to vector<8x128xf32>
    %404 = arith.mulf %403, %402 : vector<8x128xf32>
    %405 = arith.addf %379, %404 : vector<8x128xf32>
    %c54 = arith.constant 54 : index
    %c0_163 = arith.constant 0 : index
    %c0_164 = arith.constant 0 : index
    %406 = vector.load %arg2[%c54, %c0_163, %c0_164] : memref<64x8x128xf32, #tpu.memory_space<vmem>>, vector<1x8x128xf32>
    %407 = vector.shape_cast %406 : vector<1x8x128xf32> to vector<8x128xf32>
    %408 = vector.broadcast %0 : f32 to vector<8x128xf32>
    %409 = arith.mulf %408, %407 : vector<8x128xf32>
    %c55 = arith.constant 55 : index
    %c0_165 = arith.constant 0 : index
    %c0_166 = arith.constant 0 : index
    %410 = vector.load %arg2[%c55, %c0_165, %c0_166] : memref<64x8x128xf32, #tpu.memory_space<vmem>>, vector<1x8x128xf32>
    %411 = vector.shape_cast %410 : vector<1x8x128xf32> to vector<8x128xf32>
    %412 = vector.broadcast %1 : f32 to vector<8x128xf32>
    %413 = arith.mulf %412, %411 : vector<8x128xf32>
    %414 = arith.addf %409, %413 : vector<8x128xf32>
    %c62 = arith.constant 62 : index
    %c0_167 = arith.constant 0 : index
    %c0_168 = arith.constant 0 : index
    %415 = vector.load %arg2[%c62, %c0_167, %c0_168] : memref<64x8x128xf32, #tpu.memory_space<vmem>>, vector<1x8x128xf32>
    %416 = vector.shape_cast %415 : vector<1x8x128xf32> to vector<8x128xf32>
    %417 = vector.broadcast %2 : f32 to vector<8x128xf32>
    %418 = arith.mulf %417, %416 : vector<8x128xf32>
    %419 = arith.addf %414, %418 : vector<8x128xf32>
    %c63 = arith.constant 63 : index
    %c0_169 = arith.constant 0 : index
    %c0_170 = arith.constant 0 : index
    %420 = vector.load %arg2[%c63, %c0_169, %c0_170] : memref<64x8x128xf32, #tpu.memory_space<vmem>>, vector<1x8x128xf32>
    %421 = vector.shape_cast %420 : vector<1x8x128xf32> to vector<8x128xf32>
    %422 = vector.broadcast %3 : f32 to vector<8x128xf32>
    %423 = arith.mulf %422, %421 : vector<8x128xf32>
    %424 = arith.addf %419, %423 : vector<8x128xf32>
    %cst_171 = arith.constant 2.000000e-01 : f32
    %425 = vector.broadcast %cst_171 : f32 to vector<8x128xf32>
    %426 = arith.subf %424, %425 : vector<8x128xf32>
    %cst_172 = arith.constant 0.000000e+00 : f32
    %427 = vector.broadcast %cst_172 : f32 to vector<8x128xf32>
    %428 = arith.maximumf %426, %427 : vector<8x128xf32>
    %429 = vector.broadcast %7 : f32 to vector<8x128xf32>
    %430 = arith.mulf %429, %428 : vector<8x128xf32>
    %431 = arith.addf %405, %430 : vector<8x128xf32>
    %cst_173 = arith.constant 2.000000e+00 : f32
    %432 = vector.broadcast %cst_173 : f32 to vector<8x128xf32>
    %433 = arith.subf %431, %432 : vector<8x128xf32>
    %cst_174 = arith.constant 0.000000e+00 : f32
    %434 = vector.broadcast %cst_174 : f32 to vector<8x128xf32>
    %435 = arith.maximumf %433, %434 : vector<8x128xf32>
    %c20_175 = arith.constant 20 : index
    %436 = memref.load %arg1[%c20_175] : memref<31xf32, #tpu.memory_space<smem>>
    %c8_176 = arith.constant 8 : index
    %437 = memref.load %arg1[%c8_176] : memref<31xf32, #tpu.memory_space<smem>>
    %438 = vector.broadcast %437 : f32 to vector<8x128xf32>
    %439 = arith.mulf %438, %114 : vector<8x128xf32>
    %440 = vector.broadcast %436 : f32 to vector<8x128xf32>
    %441 = arith.addf %440, %439 : vector<8x128xf32>
    %c9_177 = arith.constant 9 : index
    %442 = memref.load %arg1[%c9_177] : memref<31xf32, #tpu.memory_space<smem>>
    %443 = vector.broadcast %442 : f32 to vector<8x128xf32>
    %444 = arith.mulf %443, %221 : vector<8x128xf32>
    %445 = arith.addf %441, %444 : vector<8x128xf32>
    %c10_178 = arith.constant 10 : index
    %446 = memref.load %arg1[%c10_178] : memref<31xf32, #tpu.memory_space<smem>>
    %447 = vector.broadcast %446 : f32 to vector<8x128xf32>
    %448 = arith.mulf %447, %328 : vector<8x128xf32>
    %449 = arith.addf %445, %448 : vector<8x128xf32>
    %c11_179 = arith.constant 11 : index
    %450 = memref.load %arg1[%c11_179] : memref<31xf32, #tpu.memory_space<smem>>
    %451 = vector.broadcast %450 : f32 to vector<8x128xf32>
    %452 = arith.mulf %451, %435 : vector<8x128xf32>
    %453 = arith.addf %449, %452 : vector<8x128xf32>
    %cst_180 = arith.constant 0.000000e+00 : f32
    %454 = vector.broadcast %cst_180 : f32 to vector<8x128xf32>
    %455 = arith.maximumf %453, %454 : vector<8x128xf32>
    %c21_181 = arith.constant 21 : index
    %456 = memref.load %arg1[%c21_181] : memref<31xf32, #tpu.memory_space<smem>>
    %c12_182 = arith.constant 12 : index
    %457 = memref.load %arg1[%c12_182] : memref<31xf32, #tpu.memory_space<smem>>
    %458 = vector.broadcast %457 : f32 to vector<8x128xf32>
    %459 = arith.mulf %458, %114 : vector<8x128xf32>
    %460 = vector.broadcast %456 : f32 to vector<8x128xf32>
    %461 = arith.addf %460, %459 : vector<8x128xf32>
    %c13_183 = arith.constant 13 : index
    %462 = memref.load %arg1[%c13_183] : memref<31xf32, #tpu.memory_space<smem>>
    %463 = vector.broadcast %462 : f32 to vector<8x128xf32>
    %464 = arith.mulf %463, %221 : vector<8x128xf32>
    %465 = arith.addf %461, %464 : vector<8x128xf32>
    %c14_184 = arith.constant 14 : index
    %466 = memref.load %arg1[%c14_184] : memref<31xf32, #tpu.memory_space<smem>>
    %467 = vector.broadcast %466 : f32 to vector<8x128xf32>
    %468 = arith.mulf %467, %328 : vector<8x128xf32>
    %469 = arith.addf %465, %468 : vector<8x128xf32>
    %c15_185 = arith.constant 15 : index
    %470 = memref.load %arg1[%c15_185] : memref<31xf32, #tpu.memory_space<smem>>
    %471 = vector.broadcast %470 : f32 to vector<8x128xf32>
    %472 = arith.mulf %471, %435 : vector<8x128xf32>
    %473 = arith.addf %469, %472 : vector<8x128xf32>
    %cst_186 = arith.constant 0.000000e+00 : f32
    %474 = vector.broadcast %cst_186 : f32 to vector<8x128xf32>
    %475 = arith.maximumf %473, %474 : vector<8x128xf32>
    %c22_187 = arith.constant 22 : index
    %476 = memref.load %arg1[%c22_187] : memref<31xf32, #tpu.memory_space<smem>>
    %c16_188 = arith.constant 16 : index
    %477 = memref.load %arg1[%c16_188] : memref<31xf32, #tpu.memory_space<smem>>
    %478 = vector.broadcast %477 : f32 to vector<8x128xf32>
    %479 = arith.mulf %478, %114 : vector<8x128xf32>
    %480 = vector.broadcast %476 : f32 to vector<8x128xf32>
    %481 = arith.addf %480, %479 : vector<8x128xf32>
    %c17_189 = arith.constant 17 : index
    %482 = memref.load %arg1[%c17_189] : memref<31xf32, #tpu.memory_space<smem>>
    %483 = vector.broadcast %482 : f32 to vector<8x128xf32>
    %484 = arith.mulf %483, %221 : vector<8x128xf32>
    %485 = arith.addf %481, %484 : vector<8x128xf32>
    %c18_190 = arith.constant 18 : index
    %486 = memref.load %arg1[%c18_190] : memref<31xf32, #tpu.memory_space<smem>>
    %487 = vector.broadcast %486 : f32 to vector<8x128xf32>
    %488 = arith.mulf %487, %328 : vector<8x128xf32>
    %489 = arith.addf %485, %488 : vector<8x128xf32>
    %c19_191 = arith.constant 19 : index
    %490 = memref.load %arg1[%c19_191] : memref<31xf32, #tpu.memory_space<smem>>
    %491 = vector.broadcast %490 : f32 to vector<8x128xf32>
    %492 = arith.mulf %491, %435 : vector<8x128xf32>
    %493 = arith.addf %489, %492 : vector<8x128xf32>
    %cst_192 = arith.constant 0.000000e+00 : f32
    %494 = vector.broadcast %cst_192 : f32 to vector<8x128xf32>
    %495 = arith.maximumf %493, %494 : vector<8x128xf32>
    %c29_193 = arith.constant 29 : index
    %496 = memref.load %arg1[%c29_193] : memref<31xf32, #tpu.memory_space<smem>>
    %c23_194 = arith.constant 23 : index
    %497 = memref.load %arg1[%c23_194] : memref<31xf32, #tpu.memory_space<smem>>
    %498 = vector.broadcast %497 : f32 to vector<8x128xf32>
    %499 = arith.mulf %498, %455 : vector<8x128xf32>
    %500 = vector.broadcast %496 : f32 to vector<8x128xf32>
    %501 = arith.addf %500, %499 : vector<8x128xf32>
    %c24_195 = arith.constant 24 : index
    %502 = memref.load %arg1[%c24_195] : memref<31xf32, #tpu.memory_space<smem>>
    %503 = vector.broadcast %502 : f32 to vector<8x128xf32>
    %504 = arith.mulf %503, %475 : vector<8x128xf32>
    %505 = arith.addf %501, %504 : vector<8x128xf32>
    %c25_196 = arith.constant 25 : index
    %506 = memref.load %arg1[%c25_196] : memref<31xf32, #tpu.memory_space<smem>>
    %507 = vector.broadcast %506 : f32 to vector<8x128xf32>
    %508 = arith.mulf %507, %495 : vector<8x128xf32>
    %509 = arith.addf %505, %508 : vector<8x128xf32>
    %c30_197 = arith.constant 30 : index
    %510 = memref.load %arg1[%c30_197] : memref<31xf32, #tpu.memory_space<smem>>
    %c26_198 = arith.constant 26 : index
    %511 = memref.load %arg1[%c26_198] : memref<31xf32, #tpu.memory_space<smem>>
    %512 = vector.broadcast %511 : f32 to vector<8x128xf32>
    %513 = arith.mulf %512, %455 : vector<8x128xf32>
    %514 = vector.broadcast %510 : f32 to vector<8x128xf32>
    %515 = arith.addf %514, %513 : vector<8x128xf32>
    %c27_199 = arith.constant 27 : index
    %516 = memref.load %arg1[%c27_199] : memref<31xf32, #tpu.memory_space<smem>>
    %517 = vector.broadcast %516 : f32 to vector<8x128xf32>
    %518 = arith.mulf %517, %475 : vector<8x128xf32>
    %519 = arith.addf %515, %518 : vector<8x128xf32>
    %c28_200 = arith.constant 28 : index
    %520 = memref.load %arg1[%c28_200] : memref<31xf32, #tpu.memory_space<smem>>
    %521 = vector.broadcast %520 : f32 to vector<8x128xf32>
    %522 = arith.mulf %521, %495 : vector<8x128xf32>
    %523 = arith.addf %519, %522 : vector<8x128xf32>
    %524 = arith.maximumf %509, %523 : vector<8x128xf32>
    %525 = arith.subf %509, %524 : vector<8x128xf32>
    %526 = math.exp %525 : vector<8x128xf32>
    %527 = arith.subf %523, %524 : vector<8x128xf32>
    %528 = math.exp %527 : vector<8x128xf32>
    %529 = arith.addf %526, %528 : vector<8x128xf32>
    %530 = tpu.reciprocal %529 {approx = true} : vector<8x128xf32> -> vector<8x128xf32>
    %531 = arith.mulf %526, %530 : vector<8x128xf32>
    %c0_201 = arith.constant 0 : index
    %c0_202 = arith.constant 0 : index
    %c0_203 = arith.constant 0 : index
    %532 = vector.load %arg3[%c0_201, %c0_202, %c0_203] : memref<2x8x128xf32, #tpu.memory_space<vmem>>, vector<1x8x128xf32>
    %533 = vector.shape_cast %532 : vector<1x8x128xf32> to vector<8x128xf32>
    %534 = vector.shape_cast %531 : vector<8x128xf32> to vector<1x8x128xf32>
    tpu.vector_store %arg3[%c0_201, %c0_202, %c0_203], %534 {strides = array<i32>} : memref<2x8x128xf32, #tpu.memory_space<vmem>>, vector<1x8x128xf32>,
    %535 = arith.mulf %528, %530 : vector<8x128xf32>
    %c1_204 = arith.constant 1 : index
    %c0_205 = arith.constant 0 : index
    %c0_206 = arith.constant 0 : index
    %536 = vector.load %arg3[%c1_204, %c0_205, %c0_206] : memref<2x8x128xf32, #tpu.memory_space<vmem>>, vector<1x8x128xf32>
    %537 = vector.shape_cast %536 : vector<1x8x128xf32> to vector<8x128xf32>
    %538 = vector.shape_cast %535 : vector<8x128xf32> to vector<1x8x128xf32>
    tpu.vector_store %arg3[%c1_204, %c0_205, %c0_206], %538 {strides = array<i32>} : memref<2x8x128xf32, #tpu.memory_space<vmem>>, vector<1x8x128xf32>,
    %c0_207 = arith.constant 0 : index
    %c0_208 = arith.constant 0 : index
    %c0_209 = arith.constant 0 : index
    %539 = vector.load %arg4[%c0_207, %c0_208, %c0_209] : memref<2x8x128xf32, #tpu.memory_space<vmem>>, vector<1x8x128xf32>
    %540 = vector.shape_cast %539 : vector<1x8x128xf32> to vector<8x128xf32>
    %541 = vector.shape_cast %509 : vector<8x128xf32> to vector<1x8x128xf32>
    tpu.vector_store %arg4[%c0_207, %c0_208, %c0_209], %541 {strides = array<i32>} : memref<2x8x128xf32, #tpu.memory_space<vmem>>, vector<1x8x128xf32>,
    %c1_210 = arith.constant 1 : index
    %c0_211 = arith.constant 0 : index
    %c0_212 = arith.constant 0 : index
    %542 = vector.load %arg4[%c1_210, %c0_211, %c0_212] : memref<2x8x128xf32, #tpu.memory_space<vmem>>, vector<1x8x128xf32>
    %543 = vector.shape_cast %542 : vector<1x8x128xf32> to vector<8x128xf32>
    %544 = vector.shape_cast %523 : vector<8x128xf32> to vector<1x8x128xf32>
    tpu.vector_store %arg4[%c1_210, %c0_211, %c0_212], %544 {strides = array<i32>} : memref<2x8x128xf32, #tpu.memory_space<vmem>>, vector<1x8x128xf32>,
    return
  }
  func.func @transform_0(%arg0: i32) -> i32 {
    %c0_i32 = arith.constant 0 : i32
    %c0_i32_0 = arith.constant 0 : i32
    return %c0_i32 : i32
  }
  func.func @transform_1(%arg0: i32) -> (i32, i32, i32) {
    %c0_i32 = arith.constant 0 : i32
    %c0_i32_0 = arith.constant 0 : i32
    %c0_i32_1 = arith.constant 0 : i32
    return %c0_i32, %c0_i32_0, %arg0 : i32, i32, i32
  }
  func.func @transform_2(%arg0: i32) -> (i32, i32, i32) {
    %c0_i32 = arith.constant 0 : i32
    %c0_i32_0 = arith.constant 0 : i32
    %c0_i32_1 = arith.constant 0 : i32
    return %c0_i32, %c0_i32_0, %arg0 : i32, i32, i32
  }
  func.func @transform_3(%arg0: i32) -> (i32, i32, i32) {
    %c0_i32 = arith.constant 0 : i32
    %c0_i32_0 = arith.constant 0 : i32
    %c0_i32_1 = arith.constant 0 : i32
    return %c0_i32, %c0_i32_0, %arg0 : i32, i32, i32
  }
}

</mosaic_0001>

<llo_original>
// kernel: tpu_custom_call.1
$region0: #{tpu_custom_call.1}
  #allocation0 [shape = 'u32[]', space=smem, size = 0x4, offset = 0x4, fixed_abs, tag = 'smem constant byte address 0x4 - core index']
  #allocation1 [shape = 'u32[72,128]{1,0:T(1,128)}', space=vmem, size = 0x9000, scoped, tag = 'internal scratch']
  %s0 = inlined_call_operand.hbm [shape: f32[31], index: 0, kind: input, shape index: {}]
  %s1 = inlined_call_operand.hbm [shape: f32[64,8,128], index: 1, kind: input, shape index: {}]
  %s2 = inlined_call_operand.hbm [shape: f32[2,8,128], index: 2, kind: output, shape index: {0}]
  %s3 = inlined_call_operand.hbm [shape: f32[2,8,128], index: 3, kind: output, shape index: {1}]
  %4 = xla_tuple %s2, %s3
  %s5 = sld [smem:[#allocation0]]
  $region34: #{tpu_custom_call.1} parent=0
    _
  %s7 = ssub.s32 1, %s5
  %s8 = scalar_select 0, %s7, %s5
  $region1: #{tpu_custom_call.1} parent=0
    #allocation2 [shape = 'u8[512]{0}', space=smem, size = 0x200, scoped, tag = 'input window, operand 0, single buffered']
    #allocation3 [shape = 's32[1]{0}', space=sflag, size = 0x4, scoped, tag = 'scoped memory for tpu_custom_call.1']
    #allocation4 [shape = 's32[1]{0}', space=sflag, size = 0x4, scoped, tag = 'scoped memory for tpu_custom_call.1']
    #allocation5 [shape = 's32[1]{0}', space=sflag, size = 0x4, scoped, tag = 'scoped memory for tpu_custom_call.1']
    #allocation6 [shape = 'u8[262144]{0}', space=vmem, size = 0x40000, scoped, tag = 'input window, operand 1, single buffered']
    #allocation7 [shape = 'u8[8192]{0}', space=vmem, size = 0x2000, scoped, tag = 'output window, operand 0, single buffered']
    #allocation8 [shape = 'u8[8192]{0}', space=vmem, size = 0x2000, scoped, tag = 'output window, operand 1, single buffered']
    #allocation9 [shape = 's32[1]{0}', space=sflag, size = 0x4, scoped, tag = 'scoped memory for tpu_custom_call.1']
    %9 = vsyncpa [#allocation5], 0
    %10 = vsyncpa [#allocation3], 0
    %11 = vsyncpa [#allocation4], 0
    %12 = vsyncpa [#allocation9], 0
    // Predicated region
    $region2: #{tpu_custom_call.1} parent=1 // pred_check
      _
    $region3: #{tpu_custom_call.1} parent=1 // pred_check_branch
      %14 = sbr.rel (0) target = $region5
    $region4: #{tpu_custom_call.1} parent=1 // pred_region
      %16 = vsyncadd [#allocation5], 0
      %s18 = sshll.u32 %s0, 4
      %s19 = int_to_ptr.hbm [resolvable:$true] %s18
      %21 = dma.hbm_to_smem %s19, 16, [#allocation2], [#allocation5]
    $region5: #{tpu_custom_call.1} parent=1 // pred_fallthru
      _
    // Predicated region
    $region6: #{tpu_custom_call.1} parent=1 // pred_check
      _
    $region7: #{tpu_custom_call.1} parent=1 // pred_check_branch
      %23 = sbr.rel (0) target = $region9
    $region8: #{tpu_custom_call.1} parent=1 // pred_region
      %25 = vsyncadd [#allocation3], 0
      %s26 = sshll.u32 %s1, 4
      %s27 = int_to_ptr.hbm [resolvable:$true] %s26
      %s28 = sshll.u32 [#allocation6], 4
      %s29 = int_to_ptr.vmem [resolvable:$true] %s28
      %34 = dma.hbm_to_vmem [thread:$0]  %s27, 8192, %s29, [#allocation3], 128, 128, 8
    $region9: #{tpu_custom_call.1} parent=1 // pred_fallthru
      _
    // Predicated region
    $region10: #{tpu_custom_call.1} parent=1 // pred_check
      _
    $region11: #{tpu_custom_call.1} parent=1 // pred_check_branch
      %36 = sbr.rel (0) target = $region13
    $region12: #{tpu_custom_call.1} parent=1 // pred_region
      %38 = dma.done [#allocation5], 16
    $region13: #{tpu_custom_call.1} parent=1 // pred_fallthru
      _
    // Predicated region
    $region14: #{tpu_custom_call.1} parent=1 // pred_check
      _
    $region15: #{tpu_custom_call.1} parent=1 // pred_check_branch
      %40 = sbr.rel (0) target = $region17
    $region16: #{tpu_custom_call.1} parent=1 // pred_region
      %42 = dma.done [#allocation3], 8192
    $region17: #{tpu_custom_call.1} parent=1 // pred_fallthru
      _
    %43 = sfence
    %s44 = sld [smem:[#allocation2]]
    %s45 = sld [smem:[#allocation2 + $0x1]]
    %s46 = sld [smem:[#allocation2 + $0x2]]
    %s47 = sld [smem:[#allocation2 + $0x3]]
    %s48 = sld [smem:[#allocation2 + $0x4]]
    %s49 = sld [smem:[#allocation2 + $0x5]]
    %s50 = sld [smem:[#allocation2 + $0x6]]
    %s51 = sld [smem:[#allocation2 + $0x7]]
    %v52 = vld [vmem:[#allocation6] sm:$0xff]
    %v53 = vstv %s44
    %v54 = vmul.f32 %v53, %v52
    %s55 = scalar_lea.vmem [#allocation6], 8
    %v56 = vld [vmem:[%s55] sm:$0xff]
    %v57 = vstv %s45
    %v58 = vmul.f32 %v57, %v56
    %v59 = vadd.f32 %v54, %v58
    %s60 = scalar_lea.vmem [#allocation6], 64
    %v61 = vld [vmem:[%s60] sm:$0xff]
    %v62 = vstv %s46
    %v63 = vmul.f32 %v62, %v61
    %v64 = vadd.f32 %v59, %v63
    %s65 = scalar_lea.vmem [#allocation6], 72
    %v66 = vld [vmem:[%s65] sm:$0xff]
    %v67 = vstv %s47
    %v68 = vmul.f32 %v67, %v66
    %v69 = vadd.f32 %v64, %v68
    %v70 = vsub.f32 %v69, 0.2
    %v71 = vmax.f32 %v70, 0.0
    %v72 = vstv %s48
    %v73 = vmul.f32 %v72, %v71
    %s74 = scalar_lea.vmem [#allocation6], 16
    %v75 = vld [vmem:[%s74] sm:$0xff]
    %v76 = vmul.f32 %v53, %v75
    %s77 = scalar_lea.vmem [#allocation6], 24
    %v78 = vld [vmem:[%s77] sm:$0xff]
    %v79 = vmul.f32 %v57, %v78
    %v80 = vadd.f32 %v76, %v79
    %s81 = scalar_lea.vmem [#allocation6], 80
    %v82 = vld [vmem:[%s81] sm:$0xff]
    %v83 = vmul.f32 %v62, %v82
    %v84 = vadd.f32 %v80, %v83
    %s85 = scalar_lea.vmem [#allocation6], 88
    %v86 = vld [vmem:[%s85] sm:$0xff]
    %v87 = vmul.f32 %v67, %v86
    %v88 = vadd.f32 %v84, %v87
    %v89 = vsub.f32 %v88, 0.2
    %v90 = vmax.f32 %v89, 0.0
    %v91 = vstv %s49
    %v92 = vmul.f32 %v91, %v90
    %v93 = vadd.f32 %v73, %v92
    %s94 = scalar_lea.vmem [#allocation6], 128
    %v95 = vld [vmem:[%s94] sm:$0xff]
    %v96 = vmul.f32 %v53, %v95
    %s97 = scalar_lea.vmem [#allocation6], 136
    %v98 = vld [vmem:[%s97] sm:$0xff]
    %v99 = vmul.f32 %v57, %v98
    %v100 = vadd.f32 %v96, %v99
    %s101 = scalar_lea.vmem [#allocation6], 192
    %v102 = vld [vmem:[%s101] sm:$0xff]
    %v103 = vmul.f32 %v62, %v102
    %v104 = vadd.f32 %v100, %v103
    %s105 = scalar_lea.vmem [#allocation6], 200
    %v106 = vld [vmem:[%s105] sm:$0xff]
    %v107 = vmul.f32 %v67, %v106
    %v108 = vadd.f32 %v104, %v107
    %v109 = vsub.f32 %v108, 0.2
    %v110 = vmax.f32 %v109, 0.0
    %v111 = vstv %s50
    %v112 = vmul.f32 %v111, %v110
    %v113 = vadd.f32 %v93, %v112
    %s114 = scalar_lea.vmem [#allocation6], 144
    %v115 = vld [vmem:[%s114] sm:$0xff]
    %v116 = vmul.f32 %v53, %v115
    %s117 = scalar_lea.vmem [#allocation6], 152
    %v118 = vld [vmem:[%s117] sm:$0xff]
    %v119 = vmul.f32 %v57, %v118
    %v120 = vadd.f32 %v116, %v119
    %s121 = scalar_lea.vmem [#allocation6], 208
    %v122 = vld [vmem:[%s121] sm:$0xff]
    %v123 = vmul.f32 %v62, %v122
    %v124 = vadd.f32 %v120, %v123
    %s125 = scalar_lea.vmem [#allocation6], 216
    %v126 = vld [vmem:[%s125] sm:$0xff]
    %v127 = vmul.f32 %v67, %v126
    %v128 = vadd.f32 %v124, %v127
    %v129 = vsub.f32 %v128, 0.2
    %v130 = vmax.f32 %v129, 0.0
    %v131 = vstv %s51
    %v132 = vmul.f32 %v131, %v130
    %v133 = vadd.f32 %v113, %v132
    %v134 = vsub.f32 %v133, 2.0
    %v135 = vmax.f32 %v134, 0.0
    %s136 = scalar_lea.vmem [#allocation6], 32
    %v137 = vld [vmem:[%s136] sm:$0xff]
    %v138 = vmul.f32 %v53, %v137
    %s139 = scalar_lea.vmem [#allocation6], 40
    %v140 = vld [vmem:[%s139] sm:$0xff]
    %v141 = vmul.f32 %v57, %v140
    %v142 = vadd.f32 %v138, %v141
    %s143 = scalar_lea.vmem [#allocation6], 96
    %v144 = vld [vmem:[%s143] sm:$0xff]
    %v145 = vmul.f32 %v62, %v144
    %v146 = vadd.f32 %v142, %v145
    %s147 = scalar_lea.vmem [#allocation6], 104
    %v148 = vld [vmem:[%s147] sm:$0xff]
    %v149 = vmul.f32 %v67, %v148
    %v150 = vadd.f32 %v146, %v149
    %v151 = vsub.f32 %v150, 0.2
    %v152 = vmax.f32 %v151, 0.0
    %v153 = vmul.f32 %v72, %v152
    %s154 = scalar_lea.vmem [#allocation6], 48
    %v155 = vld [vmem:[%s154] sm:$0xff]
    %v156 = vmul.f32 %v53, %v155
    %s157 = scalar_lea.vmem [#allocation6], 56
    %v158 = vld [vmem:[%s157] sm:$0xff]
    %v159 = vmul.f32 %v57, %v158
    %v160 = vadd.f32 %v156, %v159
    %s161 = scalar_lea.vmem [#allocation6], 112
    %v162 = vld [vmem:[%s161] sm:$0xff]
    %v163 = vmul.f32 %v62, %v162
    %v164 = vadd.f32 %v160, %v163
    %s165 = scalar_lea.vmem [#allocation6], 120
    %v166 = vld [vmem:[%s165] sm:$0xff]
    %v167 = vmul.f32 %v67, %v166
    %v168 = vadd.f32 %v164, %v167
    %v169 = vsub.f32 %v168, 0.2
    %v170 = vmax.f32 %v169, 0.0
    %v171 = vmul.f32 %v91, %v170
    %v172 = vadd.f32 %v153, %v171
    %s173 = scalar_lea.vmem [#allocation6], 160
    %v174 = vld [vmem:[%s173] sm:$0xff]
    %v175 = vmul.f32 %v53, %v174
    %s176 = scalar_lea.vmem [#allocation6], 168
    %v177 = vld [vmem:[%s176] sm:$0xff]
    %v178 = vmul.f32 %v57, %v177
    %v179 = vadd.f32 %v175, %v178
    %s180 = scalar_lea.vmem [#allocation6], 224
    %v181 = vld [vmem:[%s180] sm:$0xff]
    %v182 = vmul.f32 %v62, %v181
    %v183 = vadd.f32 %v179, %v182
    %s184 = scalar_lea.vmem [#allocation6], 232
    %v185 = vld [vmem:[%s184] sm:$0xff]
    %v186 = vmul.f32 %v67, %v185
    %v187 = vadd.f32 %v183, %v186
    %v188 = vsub.f32 %v187, 0.2
    %v189 = vmax.f32 %v188, 0.0
    %v190 = vmul.f32 %v111, %v189
    %v191 = vadd.f32 %v172, %v190
    %s192 = scalar_lea.vmem [#allocation6], 176
    %v193 = vld [vmem:[%s192] sm:$0xff]
    %v194 = vmul.f32 %v53, %v193
    %s195 = scalar_lea.vmem [#allocation6], 184
    %v196 = vld [vmem:[%s195] sm:$0xff]
    %v197 = vmul.f32 %v57, %v196
    %v198 = vadd.f32 %v194, %v197
    %s199 = scalar_lea.vmem [#allocation6], 240
    %v200 = vld [vmem:[%s199] sm:$0xff]
    %v201 = vmul.f32 %v62, %v200
    %v202 = vadd.f32 %v198, %v201
    %s203 = scalar_lea.vmem [#allocation6], 248
    %v204 = vld [vmem:[%s203] sm:$0xff]
    %v205 = vmul.f32 %v67, %v204
    %v206 = vadd.f32 %v202, %v205
    %v207 = vsub.f32 %v206, 0.2
    %v208 = vmax.f32 %v207, 0.0
    %v209 = vmul.f32 %v131, %v208
    %v210 = vadd.f32 %v191, %v209
    %v211 = vsub.f32 %v210, 2.0
    %v212 = vmax.f32 %v211, 0.0
    %s213 = scalar_lea.vmem [#allocation6], 256
    %v214 = vld [vmem:[%s213] sm:$0xff]
    %v215 = vmul.f32 %v53, %v214
    %s216 = scalar_lea.vmem [#allocation6], 264
    %v217 = vld [vmem:[%s216] sm:$0xff]
    %v218 = vmul.f32 %v57, %v217
    %v219 = vadd.f32 %v215, %v218
    %s220 = scalar_lea.vmem [#allocation6], 320
    %v221 = vld [vmem:[%s220] sm:$0xff]
    %v222 = vmul.f32 %v62, %v221
    %v223 = vadd.f32 %v219, %v222
    %s224 = scalar_lea.vmem [#allocation6], 328
    %v225 = vld [vmem:[%s224] sm:$0xff]
    %v226 = vmul.f32 %v67, %v225
    %v227 = vadd.f32 %v223, %v226
    %v228 = vsub.f32 %v227, 0.2
    %v229 = vmax.f32 %v228, 0.0
    %v230 = vmul.f32 %v72, %v229
    %s231 = scalar_lea.vmem [#allocation6], 272
    %v232 = vld [vmem:[%s231] sm:$0xff]
    %v233 = vmul.f32 %v53, %v232
    %s234 = scalar_lea.vmem [#allocation6], 280
    %v235 = vld [vmem:[%s234] sm:$0xff]
    %v236 = vmul.f32 %v57, %v235
    %v237 = vadd.f32 %v233, %v236
    %s238 = scalar_lea.vmem [#allocation6], 336
    %v239 = vld [vmem:[%s238] sm:$0xff]
    %v240 = vmul.f32 %v62, %v239
    %v241 = vadd.f32 %v237, %v240
    %s242 = scalar_lea.vmem [#allocation6], 344
    %v243 = vld [vmem:[%s242] sm:$0xff]
    %v244 = vmul.f32 %v67, %v243
    %v245 = vadd.f32 %v241, %v244
    %v246 = vsub.f32 %v245, 0.2
    %v247 = vmax.f32 %v246, 0.0
    %v248 = vmul.f32 %v91, %v247
    %v249 = vadd.f32 %v230, %v248
    %s250 = scalar_lea.vmem [#allocation6], 384
    %v251 = vld [vmem:[%s250] sm:$0xff]
    %v252 = vmul.f32 %v53, %v251
    %s253 = scalar_lea.vmem [#allocation6], 392
    %v254 = vld [vmem:[%s253] sm:$0xff]
    %v255 = vmul.f32 %v57, %v254
    %v256 = vadd.f32 %v252, %v255
    %s257 = scalar_lea.vmem [#allocation6], 448
    %v258 = vld [vmem:[%s257] sm:$0xff]
    %v259 = vmul.f32 %v62, %v258
    %v260 = vadd.f32 %v256, %v259
    %s261 = scalar_lea.vmem [#allocation6], 456
    %v262 = vld [vmem:[%s261] sm:$0xff]
    %v263 = vmul.f32 %v67, %v262
    %v264 = vadd.f32 %v260, %v263
    %v265 = vsub.f32 %v264, 0.2
    %v266 = vmax.f32 %v265, 0.0
    %v267 = vmul.f32 %v111, %v266
    %v268 = vadd.f32 %v249, %v267
    %s269 = scalar_lea.vmem [#allocation6], 400
    %v270 = vld [vmem:[%s269] sm:$0xff]
    %v271 = vmul.f32 %v53, %v270
    %s272 = scalar_lea.vmem [#allocation6], 408
    %v273 = vld [vmem:[%s272] sm:$0xff]
    %v274 = vmul.f32 %v57, %v273
    %v275 = vadd.f32 %v271, %v274
    %s276 = scalar_lea.vmem [#allocation6], 464
    %v277 = vld [vmem:[%s276] sm:$0xff]
    %v278 = vmul.f32 %v62, %v277
    %v279 = vadd.f32 %v275, %v278
    %s280 = scalar_lea.vmem [#allocation6], 472
    %v281 = vld [vmem:[%s280] sm:$0xff]
    %v282 = vmul.f32 %v67, %v281
    %v283 = vadd.f32 %v279, %v282
    %v284 = vsub.f32 %v283, 0.2
    %v285 = vmax.f32 %v284, 0.0
    %v286 = vmul.f32 %v131, %v285
    %v287 = vadd.f32 %v268, %v286
    %v288 = vsub.f32 %v287, 2.0
    %v289 = vmax.f32 %v288, 0.0
    %s290 = scalar_lea.vmem [#allocation6], 288
    %v291 = vld [vmem:[%s290] sm:$0xff]
    %v292 = vmul.f32 %v53, %v291
    %s293 = scalar_lea.vmem [#allocation6], 296
    %v294 = vld [vmem:[%s293] sm:$0xff]
    %v295 = vmul.f32 %v57, %v294
    %v296 = vadd.f32 %v292, %v295
    %s297 = scalar_lea.vmem [#allocation6], 352
    %v298 = vld [vmem:[%s297] sm:$0xff]
    %v299 = vmul.f32 %v62, %v298
    %v300 = vadd.f32 %v296, %v299
    %s301 = scalar_lea.vmem [#allocation6], 360
    %v302 = vld [vmem:[%s301] sm:$0xff]
    %v303 = vmul.f32 %v67, %v302
    %v304 = vadd.f32 %v300, %v303
    %v305 = vsub.f32 %v304, 0.2
    %v306 = vmax.f32 %v305, 0.0
    %v307 = vmul.f32 %v72, %v306
    %s308 = scalar_lea.vmem [#allocation6], 304
    %v309 = vld [vmem:[%s308] sm:$0xff]
    %v310 = vmul.f32 %v53, %v309
    %s311 = scalar_lea.vmem [#allocation6], 312
    %v312 = vld [vmem:[%s311] sm:$0xff]
    %v313 = vmul.f32 %v57, %v312
    %v314 = vadd.f32 %v310, %v313
    %s315 = scalar_lea.vmem [#allocation6], 368
    %v316 = vld [vmem:[%s315] sm:$0xff]
    %v317 = vmul.f32 %v62, %v316
    %v318 = vadd.f32 %v314, %v317
    %s319 = scalar_lea.vmem [#allocation6], 376
    %v320 = vld [vmem:[%s319] sm:$0xff]
    %v321 = vmul.f32 %v67, %v320
    %v322 = vadd.f32 %v318, %v321
    %v323 = vsub.f32 %v322, 0.2
    %v324 = vmax.f32 %v323, 0.0
    %v325 = vmul.f32 %v91, %v324
    %v326 = vadd.f32 %v307, %v325
    %s327 = scalar_lea.vmem [#allocation6], 416
    %v328 = vld [vmem:[%s327] sm:$0xff]
    %v329 = vmul.f32 %v53, %v328
    %s330 = scalar_lea.vmem [#allocation6], 424
    %v331 = vld [vmem:[%s330] sm:$0xff]
    %v332 = vmul.f32 %v57, %v331
    %v333 = vadd.f32 %v329, %v332
    %s334 = scalar_lea.vmem [#allocation6], 480
    %v335 = vld [vmem:[%s334] sm:$0xff]
    %v336 = vmul.f32 %v62, %v335
    %v337 = vadd.f32 %v333, %v336
    %s338 = scalar_lea.vmem [#allocation6], 488
    %v339 = vld [vmem:[%s338] sm:$0xff]
    %v340 = vmul.f32 %v67, %v339
    %v341 = vadd.f32 %v337, %v340
    %v342 = vsub.f32 %v341, 0.2
    %v343 = vmax.f32 %v342, 0.0
    %v344 = vmul.f32 %v111, %v343
    %v345 = vadd.f32 %v326, %v344
    %s346 = scalar_lea.vmem [#allocation6], 432
    %v347 = vld [vmem:[%s346] sm:$0xff]
    %v348 = vmul.f32 %v53, %v347
    %s349 = scalar_lea.vmem [#allocation6], 440
    %v350 = vld [vmem:[%s349] sm:$0xff]
    %v351 = vmul.f32 %v57, %v350
    %v352 = vadd.f32 %v348, %v351
    %s353 = scalar_lea.vmem [#allocation6], 496
    %v354 = vld [vmem:[%s353] sm:$0xff]
    %v355 = vmul.f32 %v62, %v354
    %v356 = vadd.f32 %v352, %v355
    %s357 = scalar_lea.vmem [#allocation6], 504
    %v358 = vld [vmem:[%s357] sm:$0xff]
    %v359 = vmul.f32 %v67, %v358
    %v360 = vadd.f32 %v356, %v359
    %v361 = vsub.f32 %v360, 0.2
    %v362 = vmax.f32 %v361, 0.0
    %v363 = vmul.f32 %v131, %v362
    %v364 = vadd.f32 %v345, %v363
    %v365 = vsub.f32 %v364, 2.0
    %v366 = vmax.f32 %v365, 0.0
    %s367 = sld [smem:[#allocation2 + $0x14]]
    %s368 = sld [smem:[#allocation2 + $0x8]]
    %v369 = vstv %s368
    %v370 = vmul.f32 %v369, %v135
    %v371 = vstv %s367
    %v372 = vadd.f32 %v371, %v370
    %s373 = sld [smem:[#allocation2 + $0x9]]
    %v374 = vstv %s373
    %v375 = vmul.f32 %v374, %v212
    %v376 = vadd.f32 %v372, %v375
    %s377 = sld [smem:[#allocation2 + $0xa]]
    %v378 = vstv %s377
    %v379 = vmul.f32 %v378, %v289
    %v380 = vadd.f32 %v376, %v379
    %s381 = sld [smem:[#allocation2 + $0xb]]
    %v382 = vstv %s381
    %v383 = vmul.f32 %v382, %v366
    %v384 = vadd.f32 %v380, %v383
    %v385 = vmax.f32 %v384, 0.0
    %s386 = sld [smem:[#allocation2 + $0x15]]
    %s387 = sld [smem:[#allocation2 + $0xc]]
    %v388 = vstv %s387
    %v389 = vmul.f32 %v388, %v135
    %v390 = vstv %s386
    %v391 = vadd.f32 %v390, %v389
    %s392 = sld [smem:[#allocation2 + $0xd]]
    %v393 = vstv %s392
    %v394 = vmul.f32 %v393, %v212
    %v395 = vadd.f32 %v391, %v394
    %s396 = sld [smem:[#allocation2 + $0xe]]
    %v397 = vstv %s396
    %v398 = vmul.f32 %v397, %v289
    %v399 = vadd.f32 %v395, %v398
    %s400 = sld [smem:[#allocation2 + $0xf]]
    %v401 = vstv %s400
    %v402 = vmul.f32 %v401, %v366
    %v403 = vadd.f32 %v399, %v402
    %v404 = vmax.f32 %v403, 0.0
    %s405 = sld [smem:[#allocation2 + $0x16]]
    %s406 = sld [smem:[#allocation2 + $0x10]]
    %v407 = vstv %s406
    %v408 = vmul.f32 %v407, %v135
    %v409 = vstv %s405
    %v410 = vadd.f32 %v409, %v408
    %s411 = sld [smem:[#allocation2 + $0x11]]
    %v412 = vstv %s411
    %v413 = vmul.f32 %v412, %v212
    %v414 = vadd.f32 %v410, %v413
    %s415 = sld [smem:[#allocation2 + $0x12]]
    %v416 = vstv %s415
    %v417 = vmul.f32 %v416, %v289
    %v418 = vadd.f32 %v414, %v417
    %s419 = sld [smem:[#allocation2 + $0x13]]
    %v420 = vstv %s419
    %v421 = vmul.f32 %v420, %v366
    %v422 = vadd.f32 %v418, %v421
    %v423 = vmax.f32 %v422, 0.0
    %s424 = sld [smem:[#allocation2 + $0x1d]]
    %s425 = sld [smem:[#allocation2 + $0x17]]
    %v426 = vstv %s425
    %v427 = vmul.f32 %v426, %v385
    %v428 = vstv %s424
    %v429 = vadd.f32 %v428, %v427
    %s430 = sld [smem:[#allocation2 + $0x18]]
    %v431 = vstv %s430
    %v432 = vmul.f32 %v431, %v404
    %v433 = vadd.f32 %v429, %v432
    %s434 = sld [smem:[#allocation2 + $0x19]]
    %v435 = vstv %s434
    %v436 = vmul.f32 %v435, %v423
    %v437 = vadd.f32 %v433, %v436
    %s438 = sld [smem:[#allocation2 + $0x1e]]
    %s439 = sld [smem:[#allocation2 + $0x1a]]
    %v440 = vstv %s439
    %v441 = vmul.f32 %v440, %v385
    %v442 = vstv %s438
    %v443 = vadd.f32 %v442, %v441
    %s444 = sld [smem:[#allocation2 + $0x1b]]
    %v445 = vstv %s444
    %v446 = vmul.f32 %v445, %v404
    %v447 = vadd.f32 %v443, %v446
    %s448 = sld [smem:[#allocation2 + $0x1c]]
    %v449 = vstv %s448
    %v450 = vmul.f32 %v449, %v423
    %v451 = vadd.f32 %v447, %v450
    %v452 = vmax.f32 %v437, %v451
    %v453 = vsub.f32 %v437, %v452
    %v454 = vmul.f32 %v453, 1.442695
    %v455 = vpow.pop %v454
    %v456 = vsub.f32 %v451, %v452
    %v457 = vmul.f32 %v456, 1.442695
    %v458 = vpow.pop %v457
    %v459 = vadd.f32 %v455, %v458
    %v460 = vrcp.pop %v459
    %v461 = vmul.f32 %v455, %v460
    %462 = vst [vmem:[#allocation7] sm:$0xff] %v461
    %v463 = vmul.f32 %v458, %v460
    %s464 = scalar_lea.vmem [#allocation7], 8
    %465 = vst [vmem:[%s464] sm:$0xff] %v463
    %466 = vst [vmem:[#allocation8] sm:$0xff] %v437
    %s467 = scalar_lea.vmem [#allocation8], 8
    %468 = vst [vmem:[%s467] sm:$0xff] %v451
    // Predicated region
    $region18: #{tpu_custom_call.1} parent=1 // pred_check
      _
    $region19: #{tpu_custom_call.1} parent=1 // pred_check_branch
      %470 = sbr.rel (0) target = $region21
    $region20: #{tpu_custom_call.1} parent=1 // pred_region
      %472 = vsyncadd [#allocation4], 0
      %s473 = sshll.u32 [#allocation7], 4
      %s474 = int_to_ptr.vmem [resolvable:$true] %s473
      %s475 = sshll.u32 %s2, 4
      %s476 = int_to_ptr.hbm [resolvable:$true] %s475
      %481 = dma.vmem_to_hbm [thread:$0]  %s474, 256, %s476, [#allocation4], 128, 128, 8
    $region21: #{tpu_custom_call.1} parent=1 // pred_fallthru
      _
    // Predicated region
    $region22: #{tpu_custom_call.1} parent=1 // pred_check
      _
    $region23: #{tpu_custom_call.1} parent=1 // pred_check_branch
      %483 = sbr.rel (0) target = $region25
    $region24: #{tpu_custom_call.1} parent=1 // pred_region
      %485 = vsyncadd [#allocation9], 0
      %s486 = sshll.u32 [#allocation8], 4
      %s487 = int_to_ptr.vmem [resolvable:$true] %s486
      %s488 = sshll.u32 %s3, 4
      %s489 = int_to_ptr.hbm [resolvable:$true] %s488
      %494 = dma.vmem_to_hbm [thread:$0]  %s487, 256, %s489, [#allocation9], 128, 128, 8
    $region25: #{tpu_custom_call.1} parent=1 // pred_fallthru
      _
    // Predicated region
    $region26: #{tpu_custom_call.1} parent=1 // pred_check
      _
    $region27: #{tpu_custom_call.1} parent=1 // pred_check_branch
      %496 = sbr.rel (0) target = $region29
    $region28: #{tpu_custom_call.1} parent=1 // pred_region
      %498 = dma.done [#allocation4], 256
    $region29: #{tpu_custom_call.1} parent=1 // pred_fallthru
      _
    // Predicated region
    $region30: #{tpu_custom_call.1} parent=1 // pred_check
      _
    $region31: #{tpu_custom_call.1} parent=1 // pred_check_branch
      %500 = sbr.rel (0) target = $region33
    $region32: #{tpu_custom_call.1} parent=1 // pred_region
      %502 = dma.done [#allocation9], 256
    $region33: #{tpu_custom_call.1} parent=1 // pred_fallthru
      _
    %503 = vsyncpa [#allocation3], 1
    %504 = vsyncpa [#allocation4], 1
    %505 = vsyncpa [#allocation9], 1
    %506 = vsyncpa [#allocation5], 1

</llo_original>
